<compile_context>
chip_gen: v7x
topology: tpu7x:2x2x1
jax: 0.10.0
libtpu: 0.0.40
codegen_flags: <defaults>
</compile_context>

<pallas_src>
import functools

import numpy as np
import jax
import jax.numpy as jnp
from jax import lax
from jax.experimental import pallas as pl
from jax.experimental.pallas import tpu as pltpu


# --------------------------------------------------------------------------
# Pallas kernel: fused (fc∘Linear(.,512)) -> ReLU -> Linear(512,Kp) -> masked
# softmax.  One grid axis over batch tiles; weights are VMEM-resident.
# --------------------------------------------------------------------------
def _fused_classifier_kernel(feat_ref, w1_ref, b1_ref, w2_ref, b2_ref,
                             lohi_ref, out_ref, *, k_real):
    # feat: [TB, 512] bf16 ; w1: [512, 512] bf16 ; w2: [512, Kp] bf16
    h = jnp.dot(feat_ref[...], w1_ref[...],
                preferred_element_type=jnp.float32)
    h = jnp.maximum(h + b1_ref[...], 0.0)                           # [TB, 512]
    pred = jnp.dot(h.astype(jnp.bfloat16), w2_ref[...],
                   preferred_element_type=jnp.float32) + b2_ref[...]  # [TB, Kp]

    lo = lohi_ref[:, 0:1]                                           # [TB, 1]
    hi = lohi_ref[:, 1:2]                                           # [TB, 1]
    col = lax.broadcasted_iota(jnp.int32, pred.shape, 1)
    valid = col < k_real                        # real (non-pad) class columns
    in_group = (col >= lo) & (col < hi)         # torch mask == 1.0 columns

    # mask_softmax with exact torch semantics on the real K columns:
    #   z   = row max over the real columns (torch: x.max(dim)[0], unmasked)
    #   e   = exp(x - z) * mask   (mask = 1.0 in-group, 1e-8 otherwise)
    #   out = e / (sum(e) + 1e-7)
    # Pad columns are driven to exactly 0 via exp(-inf) -> no inf*0 NaNs.
    pred_m = jnp.where(valid, pred, -jnp.inf)
    z = jnp.max(pred_m, axis=1, keepdims=True)
    e = jnp.exp(pred_m - z) * jnp.where(in_group, 1.0, 1e-08)
    denom = jnp.sum(e, axis=1, keepdims=True) + 1e-07
    out_ref[...] = e * pl.reciprocal(denom, approx=True)


# --------------------------------------------------------------------------
# One-time parameter preparation (hoisted out of the forward hot path).
# --------------------------------------------------------------------------
def prepare_classifier_params(params, psi):
    """Compose the backbone fc into classifier layer 1, pad layer 2 to a
    lane-dense class dim, and cast the matmul weights to bf16.  Run ONCE."""
    fc_w, fc_b = params["backbone"]["fc"]
    w1, b1 = params["w1"], params["b1"]
    w2, b2 = params["w2"], params["b2"]

    K = int(np.sum(psi))
    Kp = ((K + 127) // 128) * 128                     # lane-dense output

    w_fused = fc_w @ w1                               # [512, 512]  (exact math)
    b_fused = fc_b @ w1 + b1                          # [512]

    w2p = jnp.zeros((w2.shape[0], Kp), jnp.float32).at[:, :K].set(w2)
    b2p = jnp.zeros((Kp,), jnp.float32).at[:K].set(b2)

    offs = jnp.asarray(np.concatenate([[0], np.cumsum(psi)]).astype(np.int32))

    return {
        "w1": w_fused.astype(jnp.bfloat16),
        "b1": b_fused.reshape(1, -1).astype(jnp.float32),
        "w2": w2p.astype(jnp.bfloat16),
        "b2": b2p.reshape(1, -1),
        "offs": offs,
        "K": K,
        "Kp": Kp,
    }


def _batch_tiling(B):
    """Per-grid-step batch tile TB (multiple of 16 for bf16 sublane packing)
    and padded batch Bp (multiple of TB).  Large tiles amortize the ~0.35 us
    per-step overhead; medium batches are still split into >= 2 'parallel'
    tiles so v7x's two TensorCores both get work."""
    SUB = 16                       # bf16 sublane multiple
    TB_MAX = 1024                  # ~1 MB bf16 feat per tile: fits VMEM easily
    if B <= SUB:
        TB = SUB
    elif B <= 2 * TB_MAX:
        TB = -(-B // (2 * SUB)) * SUB       # two tiles, each a 16-multiple
    else:
        TB = TB_MAX
    Bp = -(-B // TB) * TB
    return TB, Bp


@functools.lru_cache(maxsize=None)
def _make_classifier_call(TB, Bp, Kp, K, single_buffer_weights):
    def resident(shape):
        # Constant-index (VMEM-resident) block: single-buffer when supported.
        if single_buffer_weights:
            return pl.BlockSpec(shape, lambda i: (0, 0),
                                pipeline_mode=pl.Buffered(1))
        return pl.BlockSpec(shape, lambda i: (0, 0))

    return pl.pallas_call(
        functools.partial(_fused_classifier_kernel, k_real=K),
        out_shape=jax.ShapeDtypeStruct((Bp, Kp), jnp.float32),
        grid=(Bp // TB,),
        in_specs=[
            pl.BlockSpec((TB, 512), lambda i: (i, 0)),   # feat tile (bf16)
            resident((512, 512)),                        # fused W1 (bf16)
            resident((1, 512)),                          # fused b1 (f32)
            resident((512, Kp)),                         # padded W2 (bf16)
            resident((1, Kp)),                           # padded b2 (f32)
            pl.BlockSpec((TB, 2), lambda i: (i, 0)),     # packed [lo, hi)
        ],
        out_specs=pl.BlockSpec((TB, Kp), lambda i: (i, 0)),
        compiler_params=pltpu.CompilerParams(
            dimension_semantics=("parallel",)),          # 2 TCs on v7x
    )


def classifier_mask_softmax(prep, feat512, y):
    """feat512: [B, 512] pooled backbone features. Returns [B, K] f32."""
    B = feat512.shape[0]
    K, Kp = prep["K"], prep["Kp"]
    TB, Bp = _batch_tiling(B)

    # Only streamed input: pooled features, as bf16 (kernel used bf16 anyway).
    feat_bf16 = feat512.astype(jnp.bfloat16)
    featp = jnp.zeros((Bp, feat_bf16.shape[1]), jnp.bfloat16).at[:B].set(feat_bf16)

    # Per-row group boundaries [lo, hi) packed into a single (Bp, 2) input.
    lo = prep["offs"][y]
    hi = prep["offs"][y + 1]
    lohi = jnp.zeros((Bp, 2), jnp.int32).at[:B, 0].set(lo).at[:B, 1].set(hi)

    args = (featp, prep["w1"], prep["b1"], prep["w2"], prep["b2"], lohi)
    try:
        out = _make_classifier_call(TB, Bp, Kp, K, True)(*args)
        out = jax.block_until_ready(out)
    except Exception:
        # Fallback if this jax build rejects pipeline_mode=pl.Buffered(1).
        out = _make_classifier_call(TB, Bp, Kp, K, False)(*args)
    return out[:B, :K]


# --------------------------------------------------------------------------
# Plain-JAX ResNet-18 backbone (glue) -- matches torchvision resnet18 layout,
# BatchNorm in training mode (PyTorch default module state => batch stats).
# --------------------------------------------------------------------------
def _conv2d(x, w, stride, padding):
    return lax.conv_general_dilated(
        x, w, window_strides=(stride, stride),
        padding=[(padding, padding), (padding, padding)],
        dimension_numbers=("NCHW", "OIHW", "NCHW"))


def _batchnorm(x, gamma, beta, eps=1e-5):
    mean = jnp.mean(x, axis=(0, 2, 3), keepdims=True)
    var = jnp.mean((x - mean) ** 2, axis=(0, 2, 3), keepdims=True)
    xn = (x - mean) / jnp.sqrt(var + eps)
    return gamma.reshape(1, -1, 1, 1) * xn + beta.reshape(1, -1, 1, 1)


def _maxpool_3x3_s2_p1(x):
    return lax.reduce_window(
        x, -jnp.inf, lax.max,
        window_dimensions=(1, 1, 3, 3),
        window_strides=(1, 1, 2, 2),
        padding=((0, 0), (0, 0), (1, 1), (1, 1)))


def _basic_block(x, blk):
    s = blk["stride"]
    identity = x
    out = _conv2d(x, blk["conv1"], stride=s, padding=1)
    out = jax.nn.relu(_batchnorm(out, *blk["bn1"]))
    out = _conv2d(out, blk["conv2"], stride=1, padding=1)
    out = _batchnorm(out, *blk["bn2"])
    if "down_conv" in blk:
        identity = _conv2d(x, blk["down_conv"], stride=s, padding=0)
        identity = _batchnorm(identity, *blk["down_bn"])
    return jax.nn.relu(out + identity)


def resnet18_features(x, bp):
    """Backbone up to (and including) global avgpool -> [N, 512]."""
    x = _conv2d(x, bp["conv1"], stride=2, padding=3)
    x = jax.nn.relu(_batchnorm(x, *bp["bn1"]))
    x = _maxpool_3x3_s2_p1(x)
    for blocks in bp["layers"]:
        for blk in blocks:
            x = _basic_block(x, blk)
    return jnp.mean(x, axis=(2, 3))            # adaptive avgpool(1,1) + flatten


# --------------------------------------------------------------------------
# Deterministic parameter construction
# --------------------------------------------------------------------------
class _KeyGen:
    def __init__(self, key):
        self._key = key

    def __call__(self):
        self._key, sub = jax.random.split(self._key)
        return sub


def make_params(key, psi):
    kg = _KeyGen(key)

    def conv_w(o, i, kh, kw):
        fan_in = i * kh * kw
        return jax.random.normal(kg(), (o, i, kh, kw), jnp.float32) / np.sqrt(fan_in)

    def lin(i, o):
        w = jax.random.normal(kg(), (i, o), jnp.float32) / np.sqrt(i)
        b = 0.01 * jax.random.normal(kg(), (o,), jnp.float32)
        return w, b

    def bn(c):
        return (jnp.ones((c,), jnp.float32), jnp.zeros((c,), jnp.float32))

    backbone = {"conv1": conv_w(64, 3, 7, 7), "bn1": bn(64)}
    layers = []
    in_c = 64
    for out_c, stride in ((64, 1), (128, 2), (256, 2), (512, 2)):
        blocks = []
        for b_idx in range(2):
            s = stride if b_idx == 0 else 1
            blk = {"conv1": conv_w(out_c, in_c, 3, 3), "bn1": bn(out_c),
                   "conv2": conv_w(out_c, out_c, 3, 3), "bn2": bn(out_c),
                   "stride": s}
            if s != 1 or in_c != out_c:
                blk["down_conv"] = conv_w(out_c, in_c, 1, 1)
                blk["down_bn"] = bn(out_c)
            blocks.append(blk)
            in_c = out_c
        layers.append(blocks)
    backbone["layers"] = layers
    backbone["fc"] = lin(512, 1000)

    K = int(np.sum(psi))
    w1, b1 = lin(1000, 512)
    w2, b2 = lin(512, K)
    return {"backbone": backbone, "w1": w1, "b1": b1, "w2": w2, "b2": b2}


def auxiliary_net_forward(params, prep, x, y):
    feat512 = resnet18_features(x, params["backbone"]).astype(jnp.float32)
    return classifier_mask_softmax(prep, feat512, y)


# --------------------------------------------------------------------------
# Pure-JAX reference of the classifier + mask_softmax (for a sanity check).
# --------------------------------------------------------------------------
def _reference_classifier(feat512, fc_w, fc_b, w1, b1, w2, b2, psi, y):
    K = int(np.sum(psi))
    offs = np.concatenate([[0], np.cumsum(psi)]).astype(int)
    index = np.full((len(psi), K), 1e-08, dtype=np.float32)
    for i in range(len(psi)):
        index[i, offs[i]:offs[i + 1]] = 1.0
    mask = jnp.asarray(index)[y]
    x = feat512 @ fc_w + fc_b
    h = jax.nn.relu(x @ w1 + b1)
    pred = h @ w2 + b2
    z = jnp.max(pred, axis=1, keepdims=True)
    e = jnp.exp(pred - z) * mask
    return e / (jnp.sum(e, axis=1, keepdims=True) + 1e-07)


# --------------------------------------------------------------------------
if __name__ == "__main__":
    psi = (2, 3, 3)          # class_nb, K = sum(psi) = 8
    B = 2

    key = jax.random.PRNGKey(0)
    k_img, k_y, k_params = jax.random.split(key, 3)

    x = jax.random.normal(k_img, (B, 3, 64, 64), jnp.float32)   # NCHW images
    y = jax.random.randint(k_y, (B,), 0, len(psi))

    params = make_params(k_params, psi)
    prep = prepare_classifier_params(params, psi)     # one-time, hoisted

    out = auxiliary_net_forward(params, prep, x, y)
    out = jax.block_until_ready(out)

    K = int(np.sum(psi))
    assert out.shape == (B, K)
    assert bool(jnp.all(jnp.isfinite(out)))

    # Loose numerical sanity check vs. a pure-JAX f32 reference (kernel uses
    # bf16 weights/activations on the MXU + approx reciprocal, so tolerance
    # is relaxed).
    feat512 = resnet18_features(x, params["backbone"]).astype(jnp.float32)
    fc_w, fc_b = params["backbone"]["fc"]
    ref = _reference_classifier(feat512, fc_w, fc_b,
                                params["w1"], params["b1"],
                                params["w2"], params["b2"], psi, y)
    max_diff = float(jnp.max(jnp.abs(out - ref)))
    assert max_diff < 0.1, f"max diff vs reference too large: {max_diff}"

    print("KERNEL_OK")
</pallas_src>

<mosaic_0001>
module attributes {stable_mosaic.version = 11 : i64} {
  func.func @_fused_classifier_kernel(%arg0: i32, %arg1: memref<16x512xbf16, #tpu.memory_space<vmem>>, %arg2: memref<512x512xbf16, #tpu.memory_space<vmem>>, %arg3: memref<1x512xf32, #tpu.memory_space<vmem>>, %arg4: memref<512x128xbf16, #tpu.memory_space<vmem>>, %arg5: memref<1x128xf32, #tpu.memory_space<vmem>>, %arg6: memref<16x2xi32, #tpu.memory_space<vmem>>, %arg7: memref<16x128xf32, #tpu.memory_space<vmem>>) attributes {dimension_semantics = [#tpu.dimension_semantics<parallel>], iteration_bounds = array<i64: 1>, scalar_prefetch = 0 : i64, scratch_operands = 0 : i64, tpu.core_type = #tpu.core_type<tc>, window_params = [{transform_indices = @transform_0, window_bounds = array<i64: 16, 512>}, {pipeline_mode = #tpu.pipeline_mode<synchronous>, transform_indices = @transform_1, window_bounds = array<i64: 512, 512>}, {pipeline_mode = #tpu.pipeline_mode<synchronous>, transform_indices = @transform_2, window_bounds = array<i64: 1, 512>}, {pipeline_mode = #tpu.pipeline_mode<synchronous>, transform_indices = @transform_3, window_bounds = array<i64: 512, 128>}, {pipeline_mode = #tpu.pipeline_mode<synchronous>, transform_indices = @transform_4, window_bounds = array<i64: 1, 128>}, {transform_indices = @transform_5, window_bounds = array<i64: 16, 2>}, {transform_indices = @transform_6, window_bounds = array<i64: 16, 128>}]} {
    %c0 = arith.constant 0 : index
    %c0_0 = arith.constant 0 : index
    %0 = vector.load %arg1[%c0, %c0_0] : memref<16x512xbf16, #tpu.memory_space<vmem>>, vector<16x512xbf16>
    %c0_1 = arith.constant 0 : index
    %c0_2 = arith.constant 0 : index
    %1 = vector.load %arg2[%c0_1, %c0_2] : memref<512x512xbf16, #tpu.memory_space<vmem>>, vector<512x512xbf16>
    %cst = arith.constant dense<0.000000e+00> : vector<16x512xf32>
    %2 = tpu.matmul %0, %1, %cst {dimension_numbers = #tpu.dot_dimension_numbers<[1], [0], [0], [1], [0, 0, 1, 1], [], []>} : vector<16x512xbf16>, vector<512x512xbf16>, vector<16x512xf32> -> vector<16x512xf32>
    %c0_3 = arith.constant 0 : index
    %c0_4 = arith.constant 0 : index
    %3 = vector.load %arg3[%c0_3, %c0_4] : memref<1x512xf32, #tpu.memory_space<vmem>>, vector<1x512xf32>
    %4 = vector.broadcast %3 : vector<1x512xf32> to vector<16x512xf32>
    %5 = arith.addf %2, %4 : vector<16x512xf32>
    %cst_5 = arith.constant 0.000000e+00 : f32
    %6 = vector.broadcast %cst_5 : f32 to vector<16x512xf32>
    %7 = arith.maximumf %5, %6 : vector<16x512xf32>
    %8 = arith.truncf %7 : vector<16x512xf32> to vector<16x512xbf16>
    %c0_6 = arith.constant 0 : index
    %c0_7 = arith.constant 0 : index
    %9 = vector.load %arg4[%c0_6, %c0_7] : memref<512x128xbf16, #tpu.memory_space<vmem>>, vector<512x128xbf16>
    %cst_8 = arith.constant dense<0.000000e+00> : vector<16x128xf32>
    %10 = tpu.matmul %8, %9, %cst_8 {dimension_numbers = #tpu.dot_dimension_numbers<[1], [0], [0], [1], [0, 0, 1, 1], [], []>} : vector<16x512xbf16>, vector<512x128xbf16>, vector<16x128xf32> -> vector<16x128xf32>
    %c0_9 = arith.constant 0 : index
    %c0_10 = arith.constant 0 : index
    %11 = vector.load %arg5[%c0_9, %c0_10] : memref<1x128xf32, #tpu.memory_space<vmem>>, vector<1x128xf32>
    %12 = vector.broadcast %11 : vector<1x128xf32> to vector<16x128xf32>
    %13 = arith.addf %10, %12 : vector<16x128xf32>
    %c0_11 = arith.constant 0 : index
    %c0_12 = arith.constant 0 : index
    %14 = vector.load %arg6[%c0_11, %c0_12] : memref<16x2xi32, #tpu.memory_space<vmem>>, vector<16x1xi32>
    %c0_13 = arith.constant 0 : index
    %c1 = arith.constant 1 : index
    %15 = vector.load %arg6[%c0_13, %c1] : memref<16x2xi32, #tpu.memory_space<vmem>>, vector<16x1xi32>
    %16 = tpu.iota {dimensions = array<i32: 1>} : vector<16x128xi32>
    %c8_i32 = arith.constant 8 : i32
    %17 = vector.broadcast %c8_i32 : i32 to vector<16x128xi32>
    %18 = arith.cmpi slt, %16, %17 : vector<16x128xi32>
    %19 = vector.broadcast %14 : vector<16x1xi32> to vector<16x128xi32>
    %20 = arith.cmpi sge, %16, %19 : vector<16x128xi32>
    %21 = vector.broadcast %15 : vector<16x1xi32> to vector<16x128xi32>
    %22 = arith.cmpi slt, %16, %21 : vector<16x128xi32>
    %23 = arith.andi %20, %22 : vector<16x128xi1>
    %cst_14 = arith.constant 0xFF800000 : f32
    %24 = vector.broadcast %cst_14 : f32 to vector<16x128xf32>
    %25 = arith.select %18, %13, %24 : vector<16x128xi1>, vector<16x128xf32>
    %cst_15 = arith.constant dense<0xFF800000> : vector<16xf32>
    %26 = vector.multi_reduction <maximumf>, %25, %cst_15 [1] : vector<16x128xf32> to vector<16xf32>
    %27 = vector.shape_cast %26 : vector<16xf32> to vector<16x1xf32>
    %28 = vector.broadcast %27 : vector<16x1xf32> to vector<16x128xf32>
    %29 = arith.subf %25, %28 : vector<16x128xf32>
    %30 = math.exp %29 : vector<16x128xf32>
    %cst_16 = arith.constant 1.000000e+00 : f32
    %cst_17 = arith.constant 9.99999993E-9 : f32
    %31 = vector.broadcast %cst_16 : f32 to vector<16x128xf32>
    %32 = vector.broadcast %cst_17 : f32 to vector<16x128xf32>
    %33 = arith.select %23, %31, %32 : vector<16x128xi1>, vector<16x128xf32>
    %34 = arith.mulf %30, %33 : vector<16x128xf32>
    %cst_18 = arith.constant dense<0.000000e+00> : vector<16xf32>
    %35 = vector.multi_reduction <add>, %34, %cst_18 [1] : vector<16x128xf32> to vector<16xf32>
    %36 = vector.shape_cast %35 : vector<16xf32> to vector<16x1xf32>
    %cst_19 = arith.constant 1.000000e-07 : f32
    %37 = vector.broadcast %cst_19 : f32 to vector<16x1xf32>
    %38 = arith.addf %36, %37 : vector<16x1xf32>
    %39 = tpu.reciprocal %38 {approx = true} : vector<16x1xf32> -> vector<16x1xf32>
    %40 = vector.broadcast %39 : vector<16x1xf32> to vector<16x128xf32>
    %41 = arith.mulf %34, %40 : vector<16x128xf32>
    %c0_20 = arith.constant 0 : index
    %c0_21 = arith.constant 0 : index
    %42 = vector.load %arg7[%c0_20, %c0_21] : memref<16x128xf32, #tpu.memory_space<vmem>>, vector<16x128xf32>
    tpu.vector_store %arg7[%c0_20, %c0_21], %41 {strides = array<i32>} : memref<16x128xf32, #tpu.memory_space<vmem>>, vector<16x128xf32>,
    return
  }
  func.func @transform_0(%arg0: i32) -> (i32, i32) {
    %c0_i32 = arith.constant 0 : i32
    %c0_i32_0 = arith.constant 0 : i32
    return %arg0, %c0_i32 : i32, i32
  }
  func.func @transform_1(%arg0: i32) -> (i32, i32) {
    %c0_i32 = arith.constant 0 : i32
    %c0_i32_0 = arith.constant 0 : i32
    %c0_i32_1 = arith.constant 0 : i32
    return %c0_i32, %c0_i32_0 : i32, i32
  }
  func.func @transform_2(%arg0: i32) -> (i32, i32) {
    %c0_i32 = arith.constant 0 : i32
    %c0_i32_0 = arith.constant 0 : i32
    %c0_i32_1 = arith.constant 0 : i32
    return %c0_i32, %c0_i32_0 : i32, i32
  }
  func.func @transform_3(%arg0: i32) -> (i32, i32) {
    %c0_i32 = arith.constant 0 : i32
    %c0_i32_0 = arith.constant 0 : i32
    %c0_i32_1 = arith.constant 0 : i32
    return %c0_i32, %c0_i32_0 : i32, i32
  }
  func.func @transform_4(%arg0: i32) -> (i32, i32) {
    %c0_i32 = arith.constant 0 : i32
    %c0_i32_0 = arith.constant 0 : i32
    %c0_i32_1 = arith.constant 0 : i32
    return %c0_i32, %c0_i32_0 : i32, i32
  }
  func.func @transform_5(%arg0: i32) -> (i32, i32) {
    %c0_i32 = arith.constant 0 : i32
    %c0_i32_0 = arith.constant 0 : i32
    return %arg0, %c0_i32 : i32, i32
  }
  func.func @transform_6(%arg0: i32) -> (i32, i32) {
    %c0_i32 = arith.constant 0 : i32
    %c0_i32_0 = arith.constant 0 : i32
    return %arg0, %c0_i32 : i32, i32
  }
}

module attributes {stable_mosaic.version = 11 : i64} {
  func.func @_fused_classifier_kernel(%arg0: i32, %arg1: memref<16x512xbf16, #tpu.memory_space<vmem>>, %arg2: memref<512x512xbf16, #tpu.memory_space<vmem>>, %arg3: memref<1x512xf32, #tpu.memory_space<vmem>>, %arg4: memref<512x128xbf16, #tpu.memory_space<vmem>>, %arg5: memref<1x128xf32, #tpu.memory_space<vmem>>, %arg6: memref<16x2xi32, #tpu.memory_space<vmem>>, %arg7: memref<16x128xf32, #tpu.memory_space<vmem>>) attributes {dimension_semantics = [#tpu.dimension_semantics<parallel>], iteration_bounds = array<i64: 1>, scalar_prefetch = 0 : i64, scratch_operands = 0 : i64, tpu.core_type = #tpu.core_type<tc>, window_params = [{transform_indices = @transform_0, window_bounds = array<i64: 16, 512>}, {pipeline_mode = #tpu.pipeline_mode<synchronous>, transform_indices = @transform_1, window_bounds = array<i64: 512, 512>}, {pipeline_mode = #tpu.pipeline_mode<synchronous>, transform_indices = @transform_2, window_bounds = array<i64: 1, 512>}, {pipeline_mode = #tpu.pipeline_mode<synchronous>, transform_indices = @transform_3, window_bounds = array<i64: 512, 128>}, {pipeline_mode = #tpu.pipeline_mode<synchronous>, transform_indices = @transform_4, window_bounds = array<i64: 1, 128>}, {transform_indices = @transform_5, window_bounds = array<i64: 16, 2>}, {transform_indices = @transform_6, window_bounds = array<i64: 16, 128>}]} {
    %c0 = arith.constant 0 : index
    %c0_0 = arith.constant 0 : index
    %0 = vector.load %arg1[%c0, %c0_0] : memref<16x512xbf16, #tpu.memory_space<vmem>>, vector<16x512xbf16>
    %c0_1 = arith.constant 0 : index
    %c0_2 = arith.constant 0 : index
    %1 = vector.load %arg2[%c0_1, %c0_2] : memref<512x512xbf16, #tpu.memory_space<vmem>>, vector<512x512xbf16>
    %cst = arith.constant dense<0.000000e+00> : vector<16x512xf32>
    %2 = tpu.matmul %0, %1, %cst {dimension_numbers = #tpu.dot_dimension_numbers<[1], [0], [0], [1], [0, 0, 1, 1], [], []>} : vector<16x512xbf16>, vector<512x512xbf16>, vector<16x512xf32> -> vector<16x512xf32>
    %c0_3 = arith.constant 0 : index
    %c0_4 = arith.constant 0 : index
    %3 = vector.load %arg3[%c0_3, %c0_4] : memref<1x512xf32, #tpu.memory_space<vmem>>, vector<1x512xf32>
    %4 = vector.broadcast %3 : vector<1x512xf32> to vector<16x512xf32>
    %5 = arith.addf %2, %4 : vector<16x512xf32>
    %cst_5 = arith.constant 0.000000e+00 : f32
    %6 = vector.broadcast %cst_5 : f32 to vector<16x512xf32>
    %7 = arith.maximumf %5, %6 : vector<16x512xf32>
    %8 = arith.truncf %7 : vector<16x512xf32> to vector<16x512xbf16>
    %c0_6 = arith.constant 0 : index
    %c0_7 = arith.constant 0 : index
    %9 = vector.load %arg4[%c0_6, %c0_7] : memref<512x128xbf16, #tpu.memory_space<vmem>>, vector<512x128xbf16>
    %cst_8 = arith.constant dense<0.000000e+00> : vector<16x128xf32>
    %10 = tpu.matmul %8, %9, %cst_8 {dimension_numbers = #tpu.dot_dimension_numbers<[1], [0], [0], [1], [0, 0, 1, 1], [], []>} : vector<16x512xbf16>, vector<512x128xbf16>, vector<16x128xf32> -> vector<16x128xf32>
    %c0_9 = arith.constant 0 : index
    %c0_10 = arith.constant 0 : index
    %11 = vector.load %arg5[%c0_9, %c0_10] : memref<1x128xf32, #tpu.memory_space<vmem>>, vector<1x128xf32>
    %12 = vector.broadcast %11 : vector<1x128xf32> to vector<16x128xf32>
    %13 = arith.addf %10, %12 : vector<16x128xf32>
    %c0_11 = arith.constant 0 : index
    %c0_12 = arith.constant 0 : index
    %14 = vector.load %arg6[%c0_11, %c0_12] : memref<16x2xi32, #tpu.memory_space<vmem>>, vector<16x1xi32>
    %c0_13 = arith.constant 0 : index
    %c1 = arith.constant 1 : index
    %15 = vector.load %arg6[%c0_13, %c1] : memref<16x2xi32, #tpu.memory_space<vmem>>, vector<16x1xi32>
    %16 = tpu.iota {dimensions = array<i32: 1>} : vector<16x128xi32>
    %c8_i32 = arith.constant 8 : i32
    %17 = vector.broadcast %c8_i32 : i32 to vector<16x128xi32>
    %18 = arith.cmpi slt, %16, %17 : vector<16x128xi32>
    %19 = vector.broadcast %14 : vector<16x1xi32> to vector<16x128xi32>
    %20 = arith.cmpi sge, %16, %19 : vector<16x128xi32>
    %21 = vector.broadcast %15 : vector<16x1xi32> to vector<16x128xi32>
    %22 = arith.cmpi slt, %16, %21 : vector<16x128xi32>
    %23 = arith.andi %20, %22 : vector<16x128xi1>
    %cst_14 = arith.constant 0xFF800000 : f32
    %24 = vector.broadcast %cst_14 : f32 to vector<16x128xf32>
    %25 = arith.select %18, %13, %24 : vector<16x128xi1>, vector<16x128xf32>
    %cst_15 = arith.constant dense<0xFF800000> : vector<16xf32>
    %26 = vector.multi_reduction <maximumf>, %25, %cst_15 [1] : vector<16x128xf32> to vector<16xf32>
    %27 = vector.shape_cast %26 : vector<16xf32> to vector<16x1xf32>
    %28 = vector.broadcast %27 : vector<16x1xf32> to vector<16x128xf32>
    %29 = arith.subf %25, %28 : vector<16x128xf32>
    %30 = math.exp %29 : vector<16x128xf32>
    %cst_16 = arith.constant 1.000000e+00 : f32
    %cst_17 = arith.constant 9.99999993E-9 : f32
    %31 = vector.broadcast %cst_16 : f32 to vector<16x128xf32>
    %32 = vector.broadcast %cst_17 : f32 to vector<16x128xf32>
    %33 = arith.select %23, %31, %32 : vector<16x128xi1>, vector<16x128xf32>
    %34 = arith.mulf %30, %33 : vector<16x128xf32>
    %cst_18 = arith.constant dense<0.000000e+00> : vector<16xf32>
    %35 = vector.multi_reduction <add>, %34, %cst_18 [1] : vector<16x128xf32> to vector<16xf32>
    %36 = vector.shape_cast %35 : vector<16xf32> to vector<16x1xf32>
    %cst_19 = arith.constant 1.000000e-07 : f32
    %37 = vector.broadcast %cst_19 : f32 to vector<16x1xf32>
    %38 = arith.addf %36, %37 : vector<16x1xf32>
    %39 = tpu.reciprocal %38 {approx = true} : vector<16x1xf32> -> vector<16x1xf32>
    %40 = vector.broadcast %39 : vector<16x1xf32> to vector<16x128xf32>
    %41 = arith.mulf %34, %40 : vector<16x128xf32>
    %c0_20 = arith.constant 0 : index
    %c0_21 = arith.constant 0 : index
    %42 = vector.load %arg7[%c0_20, %c0_21] : memref<16x128xf32, #tpu.memory_space<vmem>>, vector<16x128xf32>
    tpu.vector_store %arg7[%c0_20, %c0_21], %41 {strides = array<i32>} : memref<16x128xf32, #tpu.memory_space<vmem>>, vector<16x128xf32>,
    return
  }
  func.func @transform_0(%arg0: i32) -> (i32, i32) {
    %c0_i32 = arith.constant 0 : i32
    %c0_i32_0 = arith.constant 0 : i32
    return %arg0, %c0_i32 : i32, i32
  }
  func.func @transform_1(%arg0: i32) -> (i32, i32) {
    %c0_i32 = arith.constant 0 : i32
    %c0_i32_0 = arith.constant 0 : i32
    %c0_i32_1 = arith.constant 0 : i32
    return %c0_i32, %c0_i32_0 : i32, i32
  }
  func.func @transform_2(%arg0: i32) -> (i32, i32) {
    %c0_i32 = arith.constant 0 : i32
    %c0_i32_0 = arith.constant 0 : i32
    %c0_i32_1 = arith.constant 0 : i32
    return %c0_i32, %c0_i32_0 : i32, i32
  }
  func.func @transform_3(%arg0: i32) -> (i32, i32) {
    %c0_i32 = arith.constant 0 : i32
    %c0_i32_0 = arith.constant 0 : i32
    %c0_i32_1 = arith.constant 0 : i32
    return %c0_i32, %c0_i32_0 : i32, i32
  }
  func.func @transform_4(%arg0: i32) -> (i32, i32) {
    %c0_i32 = arith.constant 0 : i32
    %c0_i32_0 = arith.constant 0 : i32
    %c0_i32_1 = arith.constant 0 : i32
    return %c0_i32, %c0_i32_0 : i32, i32
  }
  func.func @transform_5(%arg0: i32) -> (i32, i32) {
    %c0_i32 = arith.constant 0 : i32
    %c0_i32_0 = arith.constant 0 : i32
    return %arg0, %c0_i32 : i32, i32
  }
  func.func @transform_6(%arg0: i32) -> (i32, i32) {
    %c0_i32 = arith.constant 0 : i32
    %c0_i32_0 = arith.constant 0 : i32
    return %arg0, %c0_i32 : i32, i32
  }
}

</mosaic_0001>

<llo_original>
// kernel: tpu_custom_call.1
$region0: #{tpu_custom_call.1}
  #allocation0 [shape = 'u32[]', space=smem, size = 0x4, offset = 0x4, fixed_abs, tag = 'smem constant byte address 0x4 - core index']
  #allocation1 [shape = 'u32[144,128]{1,0:T(1,128)}', space=vmem, size = 0x12000, scoped, tag = 'internal scratch']
  %s0 = inlined_call_operand.hbm [shape: bf16[16,512], index: 0, kind: input, shape index: {}]
  %s1 = inlined_call_operand.hbm [shape: bf16[512,512], index: 1, kind: input, shape index: {}]
  %s2 = inlined_call_operand.vmem [shape: f32[1,512], index: 2, kind: input, shape index: {}]
  %s3 = inlined_call_operand.hbm [shape: bf16[512,128], index: 3, kind: input, shape index: {}]
  %s4 = inlined_call_operand.vmem [shape: f32[1,128], index: 4, kind: input, shape index: {}]
  %s5 = inlined_call_operand.vmem [shape: s32[16,2], index: 5, kind: input, shape index: {}]
  %s6 = inlined_call_operand.hbm [shape: f32[16,128], index: 6, kind: output, shape index: {}]
  %s7 = sld [smem:[#allocation0]]
  $region46: #{tpu_custom_call.1} parent=0
    _
  %s9 = ssub.s32 1, %s7
  %s10 = scalar_select 0, %s9, %s7
  $region1: #{tpu_custom_call.1} parent=0
    #allocation2 [shape = 'u8[16384]{0}', space=vmem, size = 0x4000, scoped, tag = 'input window, operand 0, single buffered']
    #allocation3 [shape = 's32[1]{0}', space=sflag, size = 0x4, scoped, tag = 'scoped memory for tpu_custom_call.1']
    #allocation4 [shape = 's32[1]{0}', space=sflag, size = 0x4, scoped, tag = 'scoped memory for tpu_custom_call.1']
    #allocation5 [shape = 'u8[524288]{0}', space=vmem, size = 0x80000, scoped, tag = 'input window, operand 1, single buffered']
    #allocation6 [shape = 's32[1]{0}', space=sflag, size = 0x4, scoped, tag = 'scoped memory for tpu_custom_call.1']
    #allocation7 [shape = 'u8[131072]{0}', space=vmem, size = 0x20000, scoped, tag = 'input window, operand 3, single buffered']
    #allocation8 [shape = 'u8[8192]{0}', space=vmem, size = 0x2000, scoped, tag = 'output window, operand 0, single buffered']
    %11 = vsyncpa [#allocation3], 0
    %12 = vsyncpa [#allocation6], 0
    %13 = vsyncpa [#allocation4], 0
    // Predicated region
    $region2: #{tpu_custom_call.1} parent=1 // pred_check
      _
    $region3: #{tpu_custom_call.1} parent=1 // pred_check_branch
      %15 = sbr.rel (0) target = $region5
    $region4: #{tpu_custom_call.1} parent=1 // pred_region
      %s17 = ssub.s32 512, 512
      %18 = vsyncadd [#allocation3], %s17
      %s19 = sshll.u32 [#allocation2], 4
      %s20 = int_to_ptr.vmem [resolvable:$true] %s19
      %25 = dma.hbm_to_vmem [thread:$0]  %s0, 512, %s20, [#allocation3], 256, 256, 16
    $region5: #{tpu_custom_call.1} parent=1 // pred_fallthru
      _
    // Predicated region
    $region6: #{tpu_custom_call.1} parent=1 // pred_check
      _
    $region7: #{tpu_custom_call.1} parent=1 // pred_check_branch
      %27 = sbr.rel (0) target = $region9
    $region8: #{tpu_custom_call.1} parent=1 // pred_region
      %s29 = ssub.s32 16384, 16384
      %30 = vsyncadd [#allocation6], %s29
      %s31 = sshll.u32 [#allocation5], 4
      %s32 = int_to_ptr.vmem [resolvable:$true] %s31
      %37 = dma.hbm_to_vmem [thread:$0]  %s1, 16384, %s32, [#allocation6], 256, 256, 16
    $region9: #{tpu_custom_call.1} parent=1 // pred_fallthru
      _
    // Predicated region
    $region10: #{tpu_custom_call.1} parent=1 // pred_check
      _
    $region11: #{tpu_custom_call.1} parent=1 // pred_check_branch
      %39 = sbr.rel (0) target = $region13
    $region12: #{tpu_custom_call.1} parent=1 // pred_region
      _
    $region13: #{tpu_custom_call.1} parent=1 // pred_fallthru
      _
    // Predicated region
    $region14: #{tpu_custom_call.1} parent=1 // pred_check
      _
    $region15: #{tpu_custom_call.1} parent=1 // pred_check_branch
      %41 = sbr.rel (0) target = $region17
    $region16: #{tpu_custom_call.1} parent=1 // pred_region
      %s43 = ssub.s32 4096, 4096
      %44 = vsyncadd [#allocation6], %s43
      %s45 = sshll.u32 [#allocation7], 4
      %s46 = int_to_ptr.vmem [resolvable:$true] %s45
      %51 = dma.hbm_to_vmem [thread:$0]  %s3, 4096, %s46, [#allocation6], 64, 64, 4
    $region17: #{tpu_custom_call.1} parent=1 // pred_fallthru
      _
    // Predicated region
    $region18: #{tpu_custom_call.1} parent=1 // pred_check
      _
    $region19: #{tpu_custom_call.1} parent=1 // pred_check_branch
      %53 = sbr.rel (0) target = $region21
    $region20: #{tpu_custom_call.1} parent=1 // pred_region
      _
    $region21: #{tpu_custom_call.1} parent=1 // pred_fallthru
      _
    // Predicated region
    $region22: #{tpu_custom_call.1} parent=1 // pred_check
      _
    $region23: #{tpu_custom_call.1} parent=1 // pred_check_branch
      %55 = sbr.rel (0) target = $region25
    $region24: #{tpu_custom_call.1} parent=1 // pred_region
      _
    $region25: #{tpu_custom_call.1} parent=1 // pred_fallthru
      _
    // Predicated region
    $region26: #{tpu_custom_call.1} parent=1 // pred_check
      _
    $region27: #{tpu_custom_call.1} parent=1 // pred_check_branch
      %57 = sbr.rel (0) target = $region29
    $region28: #{tpu_custom_call.1} parent=1 // pred_region
      %58 = dma.done [#allocation3], 512
    $region29: #{tpu_custom_call.1} parent=1 // pred_fallthru
      _
    // Predicated region
    $region30: #{tpu_custom_call.1} parent=1 // pred_check
      _
    $region31: #{tpu_custom_call.1} parent=1 // pred_check_branch
      %60 = sbr.rel (0) target = $region33
    $region32: #{tpu_custom_call.1} parent=1 // pred_region
      %61 = dma.done [#allocation6], 16384
    $region33: #{tpu_custom_call.1} parent=1 // pred_fallthru
      _
    // Predicated region
    $region34: #{tpu_custom_call.1} parent=1 // pred_check
      _
    $region35: #{tpu_custom_call.1} parent=1 // pred_check_branch
      %63 = sbr.rel (0) target = $region37
    $region36: #{tpu_custom_call.1} parent=1 // pred_region
      %64 = dma.done [#allocation6], 4096
    $region37: #{tpu_custom_call.1} parent=1 // pred_fallthru
      _
    %v66 = vld [vmem:[#allocation2] sm:$0xff]
    %v67 = vld [vmem:[#allocation2 + $0x8] sm:$0xff]
    %v68 = vld [vmem:[#allocation2 + $0x10] sm:$0xff]
    %v69 = vld [vmem:[#allocation2 + $0x18] sm:$0xff]
    %v70 = vld [vmem:[#allocation5] sm:$0xff]
    %v71 = vld [vmem:[#allocation5 + $0x8] sm:$0xff]
    %v72 = vld [vmem:[#allocation5 + $0x10] sm:$0xff]
    %v73 = vld [vmem:[#allocation5 + $0x18] sm:$0xff]
    %v74 = vld [vmem:[#allocation5 + $0x20] sm:$0xff]
    %v75 = vld [vmem:[#allocation5 + $0x28] sm:$0xff]
    %v76 = vld [vmem:[#allocation5 + $0x30] sm:$0xff]
    %v77 = vld [vmem:[#allocation5 + $0x38] sm:$0xff]
    %v78 = vld [vmem:[#allocation5 + $0x40] sm:$0xff]
    %v79 = vld [vmem:[#allocation5 + $0x48] sm:$0xff]
    %v80 = vld [vmem:[#allocation5 + $0x50] sm:$0xff]
    %v81 = vld [vmem:[#allocation5 + $0x58] sm:$0xff]
    %v82 = vld [vmem:[#allocation5 + $0x60] sm:$0xff]
    %v83 = vld [vmem:[#allocation5 + $0x68] sm:$0xff]
    %v84 = vld [vmem:[#allocation5 + $0x70] sm:$0xff]
    %v85 = vld [vmem:[#allocation5 + $0x78] sm:$0xff]
    %v86 = vld [vmem:[#allocation5 + $0x80] sm:$0xff]
    %v87 = vld [vmem:[#allocation5 + $0x88] sm:$0xff]
    %v88 = vld [vmem:[#allocation5 + $0x90] sm:$0xff]
    %v89 = vld [vmem:[#allocation5 + $0x98] sm:$0xff]
    %v90 = vld [vmem:[#allocation5 + $0xa0] sm:$0xff]
    %v91 = vld [vmem:[#allocation5 + $0xa8] sm:$0xff]
    %v92 = vld [vmem:[#allocation5 + $0xb0] sm:$0xff]
    %v93 = vld [vmem:[#allocation5 + $0xb8] sm:$0xff]
    %v94 = vld [vmem:[#allocation5 + $0xc0] sm:$0xff]
    %v95 = vld [vmem:[#allocation5 + $0xc8] sm:$0xff]
    %v96 = vld [vmem:[#allocation5 + $0xd0] sm:$0xff]
    %v97 = vld [vmem:[#allocation5 + $0xd8] sm:$0xff]
    %v98 = vld [vmem:[#allocation5 + $0xe0] sm:$0xff]
    %v99 = vld [vmem:[#allocation5 + $0xe8] sm:$0xff]
    %v100 = vld [vmem:[#allocation5 + $0xf0] sm:$0xff]
    %v101 = vld [vmem:[#allocation5 + $0xf8] sm:$0xff]
    %v102 = vld [vmem:[#allocation5 + $0x100] sm:$0xff]
    %v103 = vld [vmem:[#allocation5 + $0x108] sm:$0xff]
    %v104 = vld [vmem:[#allocation5 + $0x110] sm:$0xff]
    %v105 = vld [vmem:[#allocation5 + $0x118] sm:$0xff]
    %v106 = vld [vmem:[#allocation5 + $0x120] sm:$0xff]
    %v107 = vld [vmem:[#allocation5 + $0x128] sm:$0xff]
    %v108 = vld [vmem:[#allocation5 + $0x130] sm:$0xff]
    %v109 = vld [vmem:[#allocation5 + $0x138] sm:$0xff]
    %v110 = vld [vmem:[#allocation5 + $0x140] sm:$0xff]
    %v111 = vld [vmem:[#allocation5 + $0x148] sm:$0xff]
    %v112 = vld [vmem:[#allocation5 + $0x150] sm:$0xff]
    %v113 = vld [vmem:[#allocation5 + $0x158] sm:$0xff]
    %v114 = vld [vmem:[#allocation5 + $0x160] sm:$0xff]
    %v115 = vld [vmem:[#allocation5 + $0x168] sm:$0xff]
    %v116 = vld [vmem:[#allocation5 + $0x170] sm:$0xff]
    %v117 = vld [vmem:[#allocation5 + $0x178] sm:$0xff]
    %v118 = vld [vmem:[#allocation5 + $0x180] sm:$0xff]
    %v119 = vld [vmem:[#allocation5 + $0x188] sm:$0xff]
    %v120 = vld [vmem:[#allocation5 + $0x190] sm:$0xff]
    %v121 = vld [vmem:[#allocation5 + $0x198] sm:$0xff]
    %v122 = vld [vmem:[#allocation5 + $0x1a0] sm:$0xff]
    %v123 = vld [vmem:[#allocation5 + $0x1a8] sm:$0xff]
    %v124 = vld [vmem:[#allocation5 + $0x1b0] sm:$0xff]
    %v125 = vld [vmem:[#allocation5 + $0x1b8] sm:$0xff]
    %v126 = vld [vmem:[#allocation5 + $0x1c0] sm:$0xff]
    %v127 = vld [vmem:[#allocation5 + $0x1c8] sm:$0xff]
    %v128 = vld [vmem:[#allocation5 + $0x1d0] sm:$0xff]
    %v129 = vld [vmem:[#allocation5 + $0x1d8] sm:$0xff]
    %v130 = vld [vmem:[#allocation5 + $0x1e0] sm:$0xff]
    %v131 = vld [vmem:[#allocation5 + $0x1e8] sm:$0xff]
    %v132 = vld [vmem:[#allocation5 + $0x1f0] sm:$0xff]
    %v133 = vld [vmem:[#allocation5 + $0x1f8] sm:$0xff]
    %v134 = vld [vmem:[#allocation5 + $0x200] sm:$0xff]
    %v135 = vld [vmem:[#allocation5 + $0x208] sm:$0xff]
    %v136 = vld [vmem:[#allocation5 + $0x210] sm:$0xff]
    %v137 = vld [vmem:[#allocation5 + $0x218] sm:$0xff]
    %v138 = vld [vmem:[#allocation5 + $0x220] sm:$0xff]
    %v139 = vld [vmem:[#allocation5 + $0x228] sm:$0xff]
    %v140 = vld [vmem:[#allocation5 + $0x230] sm:$0xff]
    %v141 = vld [vmem:[#allocation5 + $0x238] sm:$0xff]
    %v142 = vld [vmem:[#allocation5 + $0x240] sm:$0xff]
    %v143 = vld [vmem:[#allocation5 + $0x248] sm:$0xff]
    %v144 = vld [vmem:[#allocation5 + $0x250] sm:$0xff]
    %v145 = vld [vmem:[#allocation5 + $0x258] sm:$0xff]
    %v146 = vld [vmem:[#allocation5 + $0x260] sm:$0xff]
    %v147 = vld [vmem:[#allocation5 + $0x268] sm:$0xff]
    %v148 = vld [vmem:[#allocation5 + $0x270] sm:$0xff]
    %v149 = vld [vmem:[#allocation5 + $0x278] sm:$0xff]
    %v150 = vld [vmem:[#allocation5 + $0x280] sm:$0xff]
    %v151 = vld [vmem:[#allocation5 + $0x288] sm:$0xff]
    %v152 = vld [vmem:[#allocation5 + $0x290] sm:$0xff]
    %v153 = vld [vmem:[#allocation5 + $0x298] sm:$0xff]
    %v154 = vld [vmem:[#allocation5 + $0x2a0] sm:$0xff]
    %v155 = vld [vmem:[#allocation5 + $0x2a8] sm:$0xff]
    %v156 = vld [vmem:[#allocation5 + $0x2b0] sm:$0xff]
    %v157 = vld [vmem:[#allocation5 + $0x2b8] sm:$0xff]
    %v158 = vld [vmem:[#allocation5 + $0x2c0] sm:$0xff]
    %v159 = vld [vmem:[#allocation5 + $0x2c8] sm:$0xff]
    %v160 = vld [vmem:[#allocation5 + $0x2d0] sm:$0xff]
    %v161 = vld [vmem:[#allocation5 + $0x2d8] sm:$0xff]
    %v162 = vld [vmem:[#allocation5 + $0x2e0] sm:$0xff]
    %v163 = vld [vmem:[#allocation5 + $0x2e8] sm:$0xff]
    %v164 = vld [vmem:[#allocation5 + $0x2f0] sm:$0xff]
    %v165 = vld [vmem:[#allocation5 + $0x2f8] sm:$0xff]
    %v166 = vld [vmem:[#allocation5 + $0x300] sm:$0xff]
    %v167 = vld [vmem:[#allocation5 + $0x308] sm:$0xff]
    %v168 = vld [vmem:[#allocation5 + $0x310] sm:$0xff]
    %v169 = vld [vmem:[#allocation5 + $0x318] sm:$0xff]
    %v170 = vld [vmem:[#allocation5 + $0x320] sm:$0xff]
    %v171 = vld [vmem:[#allocation5 + $0x328] sm:$0xff]
    %v172 = vld [vmem:[#allocation5 + $0x330] sm:$0xff]
    %v173 = vld [vmem:[#allocation5 + $0x338] sm:$0xff]
    %v174 = vld [vmem:[#allocation5 + $0x340] sm:$0xff]
    %v175 = vld [vmem:[#allocation5 + $0x348] sm:$0xff]
    %v176 = vld [vmem:[#allocation5 + $0x350] sm:$0xff]
    %v177 = vld [vmem:[#allocation5 + $0x358] sm:$0xff]
    %v178 = vld [vmem:[#allocation5 + $0x360] sm:$0xff]
    %v179 = vld [vmem:[#allocation5 + $0x368] sm:$0xff]
    %v180 = vld [vmem:[#allocation5 + $0x370] sm:$0xff]
    %v181 = vld [vmem:[#allocation5 + $0x378] sm:$0xff]
    %v182 = vld [vmem:[#allocation5 + $0x380] sm:$0xff]
    %v183 = vld [vmem:[#allocation5 + $0x388] sm:$0xff]
    %v184 = vld [vmem:[#allocation5 + $0x390] sm:$0xff]
    %v185 = vld [vmem:[#allocation5 + $0x398] sm:$0xff]
    %v186 = vld [vmem:[#allocation5 + $0x3a0] sm:$0xff]
    %v187 = vld [vmem:[#allocation5 + $0x3a8] sm:$0xff]
    %v188 = vld [vmem:[#allocation5 + $0x3b0] sm:$0xff]
    %v189 = vld [vmem:[#allocation5 + $0x3b8] sm:$0xff]
    %v190 = vld [vmem:[#allocation5 + $0x3c0] sm:$0xff]
    %v191 = vld [vmem:[#allocation5 + $0x3c8] sm:$0xff]
    %v192 = vld [vmem:[#allocation5 + $0x3d0] sm:$0xff]
    %v193 = vld [vmem:[#allocation5 + $0x3d8] sm:$0xff]
    %v194 = vld [vmem:[#allocation5 + $0x3e0] sm:$0xff]
    %v195 = vld [vmem:[#allocation5 + $0x3e8] sm:$0xff]
    %v196 = vld [vmem:[#allocation5 + $0x3f0] sm:$0xff]
    %v197 = vld [vmem:[#allocation5 + $0x3f8] sm:$0xff]
    %v198 = vld [vmem:[%s2] sm:$0xf]
    %v200 = vlaneseq
    %v201 = vshrl.u32 %v200, 7
    %v202 = vsub.s32 0, %v201
    %v203 = vrot.slane %v198, %v202
    %v204 = vlaneseq
    %v205 = vshrl.u32 %v204, 7
    %v206 = vsub.s32 1, %v205
    %v207 = vrot.slane %v198, %v206
    %v208 = vlaneseq
    %v209 = vshrl.u32 %v208, 7
    %v210 = vsub.s32 2, %v209
    %v211 = vrot.slane %v198, %v210
    %v212 = vlaneseq
    %v213 = vshrl.u32 %v212, 7
    %v214 = vsub.s32 3, %v213
    %v215 = vrot.slane %v198, %v214
    %v224 = vunpack.c.l.b16 %v66
    %v225 = vunpack.c.h.b16 %v66
    %v226 = vunpack.c.l.b16 %v67
    %v227 = vunpack.c.h.b16 %v67
    %v228 = vunpack.c.l.b16 %v68
    %v229 = vunpack.c.h.b16 %v68
    %v230 = vunpack.c.l.b16 %v69
    %v231 = vunpack.c.h.b16 %v69
    %v232 = vpack.c.b16 %v228, %v224
    %v233 = vpack.c.b16 %v229, %v225
    %v234 = vpack.c.b16 %v230, %v226
    %v235 = vpack.c.b16 %v231, %v227
    %v368 = vunpack.c.l.b16 %v70
    %v369 = vunpack.c.h.b16 %v70
    %v370 = vunpack.c.l.b16 %v71
    %v371 = vunpack.c.h.b16 %v71
    %v372 = vunpack.c.l.b16 %v72
    %v373 = vunpack.c.h.b16 %v72
    %v374 = vunpack.c.l.b16 %v73
    %v375 = vunpack.c.h.b16 %v73
    %v376 = vunpack.c.l.b16 %v74
    %v377 = vunpack.c.h.b16 %v74
    %v378 = vunpack.c.l.b16 %v75
    %v379 = vunpack.c.h.b16 %v75
    %v380 = vunpack.c.l.b16 %v76
    %v381 = vunpack.c.h.b16 %v76
    %v382 = vunpack.c.l.b16 %v77
    %v383 = vunpack.c.h.b16 %v77
    %v384 = vunpack.c.l.b16 %v78
    %v385 = vunpack.c.h.b16 %v78
    %v386 = vunpack.c.l.b16 %v79
    %v387 = vunpack.c.h.b16 %v79
    %v388 = vunpack.c.l.b16 %v80
    %v389 = vunpack.c.h.b16 %v80
    %v390 = vunpack.c.l.b16 %v81
    %v391 = vunpack.c.h.b16 %v81
    %v392 = vunpack.c.l.b16 %v82
    %v393 = vunpack.c.h.b16 %v82
    %v394 = vunpack.c.l.b16 %v83
    %v395 = vunpack.c.h.b16 %v83
    %v396 = vunpack.c.l.b16 %v84
    %v397 = vunpack.c.h.b16 %v84
    %v398 = vunpack.c.l.b16 %v85
    %v399 = vunpack.c.h.b16 %v85
    %v400 = vunpack.c.l.b16 %v86
    %v401 = vunpack.c.h.b16 %v86
    %v402 = vunpack.c.l.b16 %v87
    %v403 = vunpack.c.h.b16 %v87
    %v404 = vunpack.c.l.b16 %v88
    %v405 = vunpack.c.h.b16 %v88
    %v406 = vunpack.c.l.b16 %v89
    %v407 = vunpack.c.h.b16 %v89
    %v408 = vunpack.c.l.b16 %v90
    %v409 = vunpack.c.h.b16 %v90
    %v410 = vunpack.c.l.b16 %v91
    %v411 = vunpack.c.h.b16 %v91
    %v412 = vunpack.c.l.b16 %v92
    %v413 = vunpack.c.h.b16 %v92
    %v414 = vunpack.c.l.b16 %v93
    %v415 = vunpack.c.h.b16 %v93
    %v416 = vunpack.c.l.b16 %v94
    %v417 = vunpack.c.h.b16 %v94
    %v418 = vunpack.c.l.b16 %v95
    %v419 = vunpack.c.h.b16 %v95
    %v420 = vunpack.c.l.b16 %v96
    %v421 = vunpack.c.h.b16 %v96
    %v422 = vunpack.c.l.b16 %v97
    %v423 = vunpack.c.h.b16 %v97
    %v424 = vunpack.c.l.b16 %v98
    %v425 = vunpack.c.h.b16 %v98
    %v426 = vunpack.c.l.b16 %v99
    %v427 = vunpack.c.h.b16 %v99
    %v428 = vunpack.c.l.b16 %v100
    %v429 = vunpack.c.h.b16 %v100
    %v430 = vunpack.c.l.b16 %v101
    %v431 = vunpack.c.h.b16 %v101
    %v432 = vunpack.c.l.b16 %v102
    %v433 = vunpack.c.h.b16 %v102
    %v434 = vunpack.c.l.b16 %v103
    %v435 = vunpack.c.h.b16 %v103
    %v436 = vunpack.c.l.b16 %v104
    %v437 = vunpack.c.h.b16 %v104
    %v438 = vunpack.c.l.b16 %v105
    %v439 = vunpack.c.h.b16 %v105
    %v440 = vunpack.c.l.b16 %v106
    %v441 = vunpack.c.h.b16 %v106
    %v442 = vunpack.c.l.b16 %v107
    %v443 = vunpack.c.h.b16 %v107
    %v444 = vunpack.c.l.b16 %v108
    %v445 = vunpack.c.h.b16 %v108
    %v446 = vunpack.c.l.b16 %v109
    %v447 = vunpack.c.h.b16 %v109
    %v448 = vunpack.c.l.b16 %v110
    %v449 = vunpack.c.h.b16 %v110
    %v450 = vunpack.c.l.b16 %v111
    %v451 = vunpack.c.h.b16 %v111
    %v452 = vunpack.c.l.b16 %v112
    %v453 = vunpack.c.h.b16 %v112
    %v454 = vunpack.c.l.b16 %v113
    %v455 = vunpack.c.h.b16 %v113
    %v456 = vunpack.c.l.b16 %v114
    %v457 = vunpack.c.h.b16 %v114
    %v458 = vunpack.c.l.b16 %v115
    %v459 = vunpack.c.h.b16 %v115
    %v460 = vunpack.c.l.b16 %v116
    %v461 = vunpack.c.h.b16 %v116
    %v462 = vunpack.c.l.b16 %v117
    %v463 = vunpack.c.h.b16 %v117
    %v464 = vunpack.c.l.b16 %v118
    %v465 = vunpack.c.h.b16 %v118
    %v466 = vunpack.c.l.b16 %v119
    %v467 = vunpack.c.h.b16 %v119
    %v468 = vunpack.c.l.b16 %v120
    %v469 = vunpack.c.h.b16 %v120
    %v470 = vunpack.c.l.b16 %v121
    %v471 = vunpack.c.h.b16 %v121
    %v472 = vunpack.c.l.b16 %v122
    %v473 = vunpack.c.h.b16 %v122
    %v474 = vunpack.c.l.b16 %v123
    %v475 = vunpack.c.h.b16 %v123
    %v476 = vunpack.c.l.b16 %v124
    %v477 = vunpack.c.h.b16 %v124
    %v478 = vunpack.c.l.b16 %v125
    %v479 = vunpack.c.h.b16 %v125
    %v480 = vunpack.c.l.b16 %v126
    %v481 = vunpack.c.h.b16 %v126
    %v482 = vunpack.c.l.b16 %v127
    %v483 = vunpack.c.h.b16 %v127
    %v484 = vunpack.c.l.b16 %v128
    %v485 = vunpack.c.h.b16 %v128
    %v486 = vunpack.c.l.b16 %v129
    %v487 = vunpack.c.h.b16 %v129
    %v488 = vunpack.c.l.b16 %v130
    %v489 = vunpack.c.h.b16 %v130
    %v490 = vunpack.c.l.b16 %v131
    %v491 = vunpack.c.h.b16 %v131
    %v492 = vunpack.c.l.b16 %v132
    %v493 = vunpack.c.h.b16 %v132
    %v494 = vunpack.c.l.b16 %v133
    %v495 = vunpack.c.h.b16 %v133
    %v496 = vunpack.c.l.b16 %v134
    %v497 = vunpack.c.h.b16 %v134
    %v498 = vunpack.c.l.b16 %v135
    %v499 = vunpack.c.h.b16 %v135
    %v500 = vunpack.c.l.b16 %v136
    %v501 = vunpack.c.h.b16 %v136
    %v502 = vunpack.c.l.b16 %v137
    %v503 = vunpack.c.h.b16 %v137
    %v504 = vunpack.c.l.b16 %v138
    %v505 = vunpack.c.h.b16 %v138
    %v506 = vunpack.c.l.b16 %v139
    %v507 = vunpack.c.h.b16 %v139
    %v508 = vunpack.c.l.b16 %v140
    %v509 = vunpack.c.h.b16 %v140
    %v510 = vunpack.c.l.b16 %v141
    %v511 = vunpack.c.h.b16 %v141
    %v512 = vunpack.c.l.b16 %v142
    %v513 = vunpack.c.h.b16 %v142
    %v514 = vunpack.c.l.b16 %v143
    %v515 = vunpack.c.h.b16 %v143
    %v516 = vunpack.c.l.b16 %v144
    %v517 = vunpack.c.h.b16 %v144
    %v518 = vunpack.c.l.b16 %v145
    %v519 = vunpack.c.h.b16 %v145
    %v520 = vunpack.c.l.b16 %v146
    %v521 = vunpack.c.h.b16 %v146
    %v522 = vunpack.c.l.b16 %v147
    %v523 = vunpack.c.h.b16 %v147
    %v524 = vunpack.c.l.b16 %v148
    %v525 = vunpack.c.h.b16 %v148
    %v526 = vunpack.c.l.b16 %v149
    %v527 = vunpack.c.h.b16 %v149
    %v528 = vunpack.c.l.b16 %v150
    %v529 = vunpack.c.h.b16 %v150
    %v530 = vunpack.c.l.b16 %v151
    %v531 = vunpack.c.h.b16 %v151
    %v532 = vunpack.c.l.b16 %v152
    %v533 = vunpack.c.h.b16 %v152
    %v534 = vunpack.c.l.b16 %v153
    %v535 = vunpack.c.h.b16 %v153
    %v536 = vunpack.c.l.b16 %v154
    %v537 = vunpack.c.h.b16 %v154
    %v538 = vunpack.c.l.b16 %v155
    %v539 = vunpack.c.h.b16 %v155
    %v540 = vunpack.c.l.b16 %v156
    %v541 = vunpack.c.h.b16 %v156
    %v542 = vunpack.c.l.b16 %v157
    %v543 = vunpack.c.h.b16 %v157
    %v544 = vunpack.c.l.b16 %v158
    %v545 = vunpack.c.h.b16 %v158
    %v546 = vunpack.c.l.b16 %v159
    %v547 = vunpack.c.h.b16 %v159
    %v548 = vunpack.c.l.b16 %v160
    %v549 = vunpack.c.h.b16 %v160
    %v550 = vunpack.c.l.b16 %v161
    %v551 = vunpack.c.h.b16 %v161
    %v552 = vunpack.c.l.b16 %v162
    %v553 = vunpack.c.h.b16 %v162
    %v554 = vunpack.c.l.b16 %v163
    %v555 = vunpack.c.h.b16 %v163
    %v556 = vunpack.c.l.b16 %v164
    %v557 = vunpack.c.h.b16 %v164
    %v558 = vunpack.c.l.b16 %v165
    %v559 = vunpack.c.h.b16 %v165
    %v560 = vunpack.c.l.b16 %v166
    %v561 = vunpack.c.h.b16 %v166
    %v562 = vunpack.c.l.b16 %v167
    %v563 = vunpack.c.h.b16 %v167
    %v564 = vunpack.c.l.b16 %v168
    %v565 = vunpack.c.h.b16 %v168
    %v566 = vunpack.c.l.b16 %v169
    %v567 = vunpack.c.h.b16 %v169
    %v568 = vunpack.c.l.b16 %v170
    %v569 = vunpack.c.h.b16 %v170
    %v570 = vunpack.c.l.b16 %v171
    %v571 = vunpack.c.h.b16 %v171
    %v572 = vunpack.c.l.b16 %v172
    %v573 = vunpack.c.h.b16 %v172
    %v574 = vunpack.c.l.b16 %v173
    %v575 = vunpack.c.h.b16 %v173
    %v576 = vunpack.c.l.b16 %v174
    %v577 = vunpack.c.h.b16 %v174
    %v578 = vunpack.c.l.b16 %v175
    %v579 = vunpack.c.h.b16 %v175
    %v580 = vunpack.c.l.b16 %v176
    %v581 = vunpack.c.h.b16 %v176
    %v582 = vunpack.c.l.b16 %v177
    %v583 = vunpack.c.h.b16 %v177
    %v584 = vunpack.c.l.b16 %v178
    %v585 = vunpack.c.h.b16 %v178
    %v586 = vunpack.c.l.b16 %v179
    %v587 = vunpack.c.h.b16 %v179
    %v588 = vunpack.c.l.b16 %v180
    %v589 = vunpack.c.h.b16 %v180
    %v590 = vunpack.c.l.b16 %v181
    %v591 = vunpack.c.h.b16 %v181
    %v592 = vunpack.c.l.b16 %v182
    %v593 = vunpack.c.h.b16 %v182
    %v594 = vunpack.c.l.b16 %v183
    %v595 = vunpack.c.h.b16 %v183
    %v596 = vunpack.c.l.b16 %v184
    %v597 = vunpack.c.h.b16 %v184
    %v598 = vunpack.c.l.b16 %v185
    %v599 = vunpack.c.h.b16 %v185
    %v600 = vunpack.c.l.b16 %v186
    %v601 = vunpack.c.h.b16 %v186
    %v602 = vunpack.c.l.b16 %v187
    %v603 = vunpack.c.h.b16 %v187
    %v604 = vunpack.c.l.b16 %v188
    %v605 = vunpack.c.h.b16 %v188
    %v606 = vunpack.c.l.b16 %v189
    %v607 = vunpack.c.h.b16 %v189
    %v608 = vunpack.c.l.b16 %v190
    %v609 = vunpack.c.h.b16 %v190
    %v610 = vunpack.c.l.b16 %v191
    %v611 = vunpack.c.h.b16 %v191
    %v612 = vunpack.c.l.b16 %v192
    %v613 = vunpack.c.h.b16 %v192
    %v614 = vunpack.c.l.b16 %v193
    %v615 = vunpack.c.h.b16 %v193
    %v616 = vunpack.c.l.b16 %v194
    %v617 = vunpack.c.h.b16 %v194
    %v618 = vunpack.c.l.b16 %v195
    %v619 = vunpack.c.h.b16 %v195
    %v620 = vunpack.c.l.b16 %v196
    %v621 = vunpack.c.h.b16 %v196
    %v622 = vunpack.c.l.b16 %v197
    %v623 = vunpack.c.h.b16 %v197
    %v624 = vpack.c.b16 %v372, %v368
    %v625 = vpack.c.b16 %v373, %v369
    %v626 = vpack.c.b16 %v374, %v370
    %v627 = vpack.c.b16 %v375, %v371
    %v628 = vpack.c.b16 %v380, %v376
    %v629 = vpack.c.b16 %v381, %v377
    %v630 = vpack.c.b16 %v382, %v378
    %v631 = vpack.c.b16 %v383, %v379
    %v632 = vpack.c.b16 %v388, %v384
    %v633 = vpack.c.b16 %v389, %v385
    %v634 = vpack.c.b16 %v390, %v386
    %v635 = vpack.c.b16 %v391, %v387
    %v636 = vpack.c.b16 %v396, %v392
    %v637 = vpack.c.b16 %v397, %v393
    %v638 = vpack.c.b16 %v398, %v394
    %v639 = vpack.c.b16 %v399, %v395
    %v640 = vpack.c.b16 %v404, %v400
    %v641 = vpack.c.b16 %v405, %v401
    %v642 = vpack.c.b16 %v406, %v402
    %v643 = vpack.c.b16 %v407, %v403
    %v644 = vpack.c.b16 %v412, %v408
    %v645 = vpack.c.b16 %v413, %v409
    %v646 = vpack.c.b16 %v414, %v410
    %v647 = vpack.c.b16 %v415, %v411
    %v648 = vpack.c.b16 %v420, %v416
    %v649 = vpack.c.b16 %v421, %v417
    %v650 = vpack.c.b16 %v422, %v418
    %v651 = vpack.c.b16 %v423, %v419
    %v652 = vpack.c.b16 %v428, %v424
    %v653 = vpack.c.b16 %v429, %v425
    %v654 = vpack.c.b16 %v430, %v426
    %v655 = vpack.c.b16 %v431, %v427
    %v656 = vpack.c.b16 %v436, %v432
    %v657 = vpack.c.b16 %v437, %v433
    %v658 = vpack.c.b16 %v438, %v434
    %v659 = vpack.c.b16 %v439, %v435
    %v660 = vpack.c.b16 %v444, %v440
    %v661 = vpack.c.b16 %v445, %v441
    %v662 = vpack.c.b16 %v446, %v442
    %v663 = vpack.c.b16 %v447, %v443
    %v664 = vpack.c.b16 %v452, %v448
    %v665 = vpack.c.b16 %v453, %v449
    %v666 = vpack.c.b16 %v454, %v450
    %v667 = vpack.c.b16 %v455, %v451
    %v668 = vpack.c.b16 %v460, %v456
    %v669 = vpack.c.b16 %v461, %v457
    %v670 = vpack.c.b16 %v462, %v458
    %v671 = vpack.c.b16 %v463, %v459
    %v672 = vpack.c.b16 %v468, %v464
    %v673 = vpack.c.b16 %v469, %v465
    %v674 = vpack.c.b16 %v470, %v466
    %v675 = vpack.c.b16 %v471, %v467
    %v676 = vpack.c.b16 %v476, %v472
    %v677 = vpack.c.b16 %v477, %v473
    %v678 = vpack.c.b16 %v478, %v474
    %v679 = vpack.c.b16 %v479, %v475
    %v680 = vpack.c.b16 %v484, %v480
    %v681 = vpack.c.b16 %v485, %v481
    %v682 = vpack.c.b16 %v486, %v482
    %v683 = vpack.c.b16 %v487, %v483
    %v684 = vpack.c.b16 %v492, %v488
    %v685 = vpack.c.b16 %v493, %v489
    %v686 = vpack.c.b16 %v494, %v490
    %v687 = vpack.c.b16 %v495, %v491
    %v688 = vpack.c.b16 %v500, %v496
    %v689 = vpack.c.b16 %v501, %v497
    %v690 = vpack.c.b16 %v502, %v498
    %v691 = vpack.c.b16 %v503, %v499
    %v692 = vpack.c.b16 %v508, %v504
    %v693 = vpack.c.b16 %v509, %v505
    %v694 = vpack.c.b16 %v510, %v506
    %v695 = vpack.c.b16 %v511, %v507
    %v696 = vpack.c.b16 %v516, %v512
    %v697 = vpack.c.b16 %v517, %v513
    %v698 = vpack.c.b16 %v518, %v514
    %v699 = vpack.c.b16 %v519, %v515
    %v700 = vpack.c.b16 %v524, %v520
    %v701 = vpack.c.b16 %v525, %v521
    %v702 = vpack.c.b16 %v526, %v522
    %v703 = vpack.c.b16 %v527, %v523
    %v704 = vpack.c.b16 %v532, %v528
    %v705 = vpack.c.b16 %v533, %v529
    %v706 = vpack.c.b16 %v534, %v530
    %v707 = vpack.c.b16 %v535, %v531
    %v708 = vpack.c.b16 %v540, %v536
    %v709 = vpack.c.b16 %v541, %v537
    %v710 = vpack.c.b16 %v542, %v538
    %v711 = vpack.c.b16 %v543, %v539
    %v712 = vpack.c.b16 %v548, %v544
    %v713 = vpack.c.b16 %v549, %v545
    %v714 = vpack.c.b16 %v550, %v546
    %v715 = vpack.c.b16 %v551, %v547
    %v716 = vpack.c.b16 %v556, %v552
    %v717 = vpack.c.b16 %v557, %v553
    %v718 = vpack.c.b16 %v558, %v554
    %v719 = vpack.c.b16 %v559, %v555
    %v720 = vpack.c.b16 %v564, %v560
    %v721 = vpack.c.b16 %v565, %v561
    %v722 = vpack.c.b16 %v566, %v562
    %v723 = vpack.c.b16 %v567, %v563
    %v724 = vpack.c.b16 %v572, %v568
    %v725 = vpack.c.b16 %v573, %v569
    %v726 = vpack.c.b16 %v574, %v570
    %v727 = vpack.c.b16 %v575, %v571
    %v728 = vpack.c.b16 %v580, %v576
    %v729 = vpack.c.b16 %v581, %v577
    %v730 = vpack.c.b16 %v582, %v578
    %v731 = vpack.c.b16 %v583, %v579
    %v732 = vpack.c.b16 %v588, %v584
    %v733 = vpack.c.b16 %v589, %v585
    %v734 = vpack.c.b16 %v590, %v586
    %v735 = vpack.c.b16 %v591, %v587
    %v736 = vpack.c.b16 %v596, %v592
    %v737 = vpack.c.b16 %v597, %v593
    %v738 = vpack.c.b16 %v598, %v594
    %v739 = vpack.c.b16 %v599, %v595
    %v740 = vpack.c.b16 %v604, %v600
    %v741 = vpack.c.b16 %v605, %v601
    %v742 = vpack.c.b16 %v606, %v602
    %v743 = vpack.c.b16 %v607, %v603
    %v744 = vpack.c.b16 %v612, %v608
    %v745 = vpack.c.b16 %v613, %v609
    %v746 = vpack.c.b16 %v614, %v610
    %v747 = vpack.c.b16 %v615, %v611
    %v748 = vpack.c.b16 %v620, %v616
    %v749 = vpack.c.b16 %v621, %v617
    %v750 = vpack.c.b16 %v622, %v618
    %v751 = vpack.c.b16 %v623, %v619
    %880 = vmatprep.subr.bf16.mxu0 %v625
    %881 = vmatpush1.bf16.msra.mxu0 %v624
    %882 = vmatprep.subr.bf16.mxu0 %v629
    %883 = vmatpush1.bf16.msra.mxu0 %v628
    %884 = vmatprep.subr.bf16.mxu0 %v633
    %885 = vmatpush1.bf16.msra.mxu0 %v632
    %886 = vmatprep.subr.bf16.mxu0 %v637
    %887 = vmatpush1.bf16.msra.mxu0 %v636
    %888 = vmatprep.subr.bf16.mxu0 %v641
    %889 = vmatpush1.bf16.msra.mxu0 %v640
    %890 = vmatprep.subr.bf16.mxu0 %v645
    %891 = vmatpush1.bf16.msra.mxu0 %v644
    %892 = vmatprep.subr.bf16.mxu0 %v649
    %893 = vmatpush1.bf16.msra.mxu0 %v648
    %894 = vmatprep.subr.bf16.mxu0 %v653
    %895 = vmatpush1.bf16.msra.mxu0 %v652
    %896 = vmatprep.subr.bf16.mxu0 %v657
    %897 = vmatpush1.bf16.msra.mxu0 %v656
    %898 = vmatprep.subr.bf16.mxu0 %v661
    %899 = vmatpush1.bf16.msra.mxu0 %v660
    %900 = vmatprep.subr.bf16.mxu0 %v665
    %901 = vmatpush1.bf16.msra.mxu0 %v664
    %902 = vmatprep.subr.bf16.mxu0 %v669
    %903 = vmatpush1.bf16.msra.mxu0 %v668
    %904 = vmatprep.subr.bf16.mxu0 %v673
    %905 = vmatpush1.bf16.msra.mxu0 %v672
    %906 = vmatprep.subr.bf16.mxu0 %v677
    %907 = vmatpush1.bf16.msra.mxu0 %v676
    %908 = vmatprep.subr.bf16.mxu0 %v681
    %909 = vmatpush1.bf16.msra.mxu0 %v680
    %910 = vmatprep.subr.bf16.mxu0 %v685
    %911 = vmatpush1.bf16.msra.mxu0 %v684
    %912 = vmatprep.mubr.bf16.mxu0 %v233
    %913 = vmatmul.mubr.bf16.gmra.mrb[0].mxu0 %v232
    %v914 = vpop.f32.mrb[0].mxu0
    %v915 = vadd.f32 %v203, %v914
    %v916 = vpop.f32.mrb[0].mxu0
    %v917 = vadd.f32 %v207, %v916
    %v918 = vpop.f32.mrb[0].mxu0
    %v919 = vadd.f32 %v203, %v918
    %v920 = vpop.f32.mrb[0].mxu0
    %v921 = vadd.f32 %v207, %v920
    %922 = vdwg.mxu0
    %923 = vmatprep.subr.bf16.mxu0 %v689
    %924 = vmatpush1.bf16.msra.mxu0 %v688
    %925 = vmatprep.subr.bf16.mxu0 %v693
    %926 = vmatpush1.bf16.msra.mxu0 %v692
    %927 = vmatprep.subr.bf16.mxu0 %v697
    %928 = vmatpush1.bf16.msra.mxu0 %v696
    %929 = vmatprep.subr.bf16.mxu0 %v701
    %930 = vmatpush1.bf16.msra.mxu0 %v700
    %931 = vmatprep.subr.bf16.mxu0 %v705
    %932 = vmatpush1.bf16.msra.mxu0 %v704
    %933 = vmatprep.subr.bf16.mxu0 %v709
    %934 = vmatpush1.bf16.msra.mxu0 %v708
    %935 = vmatprep.subr.bf16.mxu0 %v713
    %936 = vmatpush1.bf16.msra.mxu0 %v712
    %937 = vmatprep.subr.bf16.mxu0 %v717
    %938 = vmatpush1.bf16.msra.mxu0 %v716
    %939 = vmatprep.subr.bf16.mxu0 %v721
    %940 = vmatpush1.bf16.msra.mxu0 %v720
    %941 = vmatprep.subr.bf16.mxu0 %v725
    %942 = vmatpush1.bf16.msra.mxu0 %v724
    %943 = vmatprep.subr.bf16.mxu0 %v729
    %944 = vmatpush1.bf16.msra.mxu0 %v728
    %945 = vmatprep.subr.bf16.mxu0 %v733
    %946 = vmatpush1.bf16.msra.mxu0 %v732
    %947 = vmatprep.subr.bf16.mxu0 %v737
    %948 = vmatpush1.bf16.msra.mxu0 %v736
    %949 = vmatprep.subr.bf16.mxu0 %v741
    %950 = vmatpush1.bf16.msra.mxu0 %v740
    %951 = vmatprep.subr.bf16.mxu0 %v745
    %952 = vmatpush1.bf16.msra.mxu0 %v744
    %953 = vmatprep.subr.bf16.mxu0 %v749
    %954 = vmatpush1.bf16.msra.mxu0 %v748
    %955 = vmatprep.mubr.bf16.mxu0 %v235
    %956 = vmatmul.mubr.bf16.gmra.mrb[0].mxu0 %v234
    %v957 = vpop.f32.mrb[0].mxu0
    %v958 = vadd.f32 %v915, %v957
    %v959 = vpop.f32.mrb[0].mxu0
    %v960 = vadd.f32 %v917, %v959
    %v961 = vpop.f32.mrb[0].mxu0
    %v962 = vadd.f32 %v919, %v961
    %v963 = vpop.f32.mrb[0].mxu0
    %v964 = vadd.f32 %v921, %v963
    %965 = vdwg.mxu0
    %966 = vmatprep.subr.bf16.mxu0 %v627
    %967 = vmatpush1.bf16.msra.mxu0 %v626
    %968 = vmatprep.subr.bf16.mxu0 %v631
    %969 = vmatpush1.bf16.msra.mxu0 %v630
    %970 = vmatprep.subr.bf16.mxu0 %v635
    %971 = vmatpush1.bf16.msra.mxu0 %v634
    %972 = vmatprep.subr.bf16.mxu0 %v639
    %973 = vmatpush1.bf16.msra.mxu0 %v638
    %974 = vmatprep.subr.bf16.mxu0 %v643
    %975 = vmatpush1.bf16.msra.mxu0 %v642
    %976 = vmatprep.subr.bf16.mxu0 %v647
    %977 = vmatpush1.bf16.msra.mxu0 %v646
    %978 = vmatprep.subr.bf16.mxu0 %v651
    %979 = vmatpush1.bf16.msra.mxu0 %v650
    %980 = vmatprep.subr.bf16.mxu0 %v655
    %981 = vmatpush1.bf16.msra.mxu0 %v654
    %982 = vmatprep.subr.bf16.mxu0 %v659
    %983 = vmatpush1.bf16.msra.mxu0 %v658
    %984 = vmatprep.subr.bf16.mxu0 %v663
    %985 = vmatpush1.bf16.msra.mxu0 %v662
    %986 = vmatprep.subr.bf16.mxu0 %v667
    %987 = vmatpush1.bf16.msra.mxu0 %v666
    %988 = vmatprep.subr.bf16.mxu0 %v671
    %989 = vmatpush1.bf16.msra.mxu0 %v670
    %990 = vmatprep.subr.bf16.mxu0 %v675
    %991 = vmatpush1.bf16.msra.mxu0 %v674
    %992 = vmatprep.subr.bf16.mxu0 %v679
    %993 = vmatpush1.bf16.msra.mxu0 %v678
    %994 = vmatprep.subr.bf16.mxu0 %v683
    %995 = vmatpush1.bf16.msra.mxu0 %v682
    %996 = vmatprep.subr.bf16.mxu0 %v687
    %997 = vmatpush1.bf16.msra.mxu0 %v686
    %998 = vmatprep.mubr.bf16.mxu0 %v233
    %999 = vmatmul.mubr.bf16.gmra.mrb[0].mxu0 %v232
    %v1000 = vpop.f32.mrb[0].mxu0
    %v1001 = vadd.f32 %v211, %v1000
    %v1002 = vpop.f32.mrb[0].mxu0
    %v1003 = vadd.f32 %v215, %v1002
    %v1004 = vpop.f32.mrb[0].mxu0
    %v1005 = vadd.f32 %v211, %v1004
    %v1006 = vpop.f32.mrb[0].mxu0
    %v1007 = vadd.f32 %v215, %v1006
    %1008 = vdwg.mxu0
    %1009 = vmatprep.subr.bf16.mxu0 %v691
    %1010 = vmatpush1.bf16.msra.mxu0 %v690
    %1011 = vmatprep.subr.bf16.mxu0 %v695
    %1012 = vmatpush1.bf16.msra.mxu0 %v694
    %1013 = vmatprep.subr.bf16.mxu0 %v699
    %1014 = vmatpush1.bf16.msra.mxu0 %v698
    %1015 = vmatprep.subr.bf16.mxu0 %v703
    %1016 = vmatpush1.bf16.msra.mxu0 %v702
    %1017 = vmatprep.subr.bf16.mxu0 %v707
    %1018 = vmatpush1.bf16.msra.mxu0 %v706
    %1019 = vmatprep.subr.bf16.mxu0 %v711
    %1020 = vmatpush1.bf16.msra.mxu0 %v710
    %1021 = vmatprep.subr.bf16.mxu0 %v715
    %1022 = vmatpush1.bf16.msra.mxu0 %v714
    %1023 = vmatprep.subr.bf16.mxu0 %v719
    %1024 = vmatpush1.bf16.msra.mxu0 %v718
    %1025 = vmatprep.subr.bf16.mxu0 %v723
    %1026 = vmatpush1.bf16.msra.mxu0 %v722
    %1027 = vmatprep.subr.bf16.mxu0 %v727
    %1028 = vmatpush1.bf16.msra.mxu0 %v726
    %1029 = vmatprep.subr.bf16.mxu0 %v731
    %1030 = vmatpush1.bf16.msra.mxu0 %v730
    %1031 = vmatprep.subr.bf16.mxu0 %v735
    %1032 = vmatpush1.bf16.msra.mxu0 %v734
    %1033 = vmatprep.subr.bf16.mxu0 %v739
    %1034 = vmatpush1.bf16.msra.mxu0 %v738
    %1035 = vmatprep.subr.bf16.mxu0 %v743
    %1036 = vmatpush1.bf16.msra.mxu0 %v742
    %1037 = vmatprep.subr.bf16.mxu0 %v747
    %1038 = vmatpush1.bf16.msra.mxu0 %v746
    %1039 = vmatprep.subr.bf16.mxu0 %v751
    %1040 = vmatpush1.bf16.msra.mxu0 %v750
    %1041 = vmatprep.mubr.bf16.mxu0 %v235
    %1042 = vmatmul.mubr.bf16.gmra.mrb[0].mxu0 %v234
    %v1043 = vpop.f32.mrb[0].mxu0
    %v1044 = vadd.f32 %v1001, %v1043
    %v1045 = vpop.f32.mrb[0].mxu0
    %v1046 = vadd.f32 %v1003, %v1045
    %v1047 = vpop.f32.mrb[0].mxu0
    %v1048 = vadd.f32 %v1005, %v1047
    %v1049 = vpop.f32.mrb[0].mxu0
    %v1050 = vadd.f32 %v1007, %v1049
    %1051 = vdwg.mxu0
    %v1052 = vmax.f32 %v958, 0.0
    %v1053 = vmax.f32 %v960, 0.0
    %v1054 = vmax.f32 %v1044, 0.0
    %v1055 = vmax.f32 %v1046, 0.0
    %v1056 = vmax.f32 %v962, 0.0
    %v1057 = vmax.f32 %v964, 0.0
    %v1058 = vmax.f32 %v1048, 0.0
    %v1059 = vmax.f32 %v1050, 0.0
    %v1060 = vpack.c.bf16 %v1056, %v1052
    %v1061 = vpack.c.bf16 %v1057, %v1053
    %v1062 = vpack.c.bf16 %v1058, %v1054
    %v1063 = vpack.c.bf16 %v1059, %v1055
    %v1064 = vld [vmem:[#allocation7] sm:$0xf]
    %v1065 = vld [vmem:[#allocation7 + $0x4] sm:$0xf]
    %v1066 = vld [vmem:[#allocation7 + $0x8] sm:$0xf]
    %v1067 = vld [vmem:[#allocation7 + $0xc] sm:$0xf]
    %v1068 = vld [vmem:[#allocation7 + $0x10] sm:$0xf]
    %v1069 = vld [vmem:[#allocation7 + $0x14] sm:$0xf]
    %v1070 = vld [vmem:[#allocation7 + $0x18] sm:$0xf]
    %v1071 = vld [vmem:[#allocation7 + $0x1c] sm:$0xf]
    %v1072 = vld [vmem:[#allocation7 + $0x20] sm:$0xf]
    %v1073 = vld [vmem:[#allocation7 + $0x24] sm:$0xf]
    %v1074 = vld [vmem:[#allocation7 + $0x28] sm:$0xf]
    %v1075 = vld [vmem:[#allocation7 + $0x2c] sm:$0xf]
    %v1076 = vld [vmem:[#allocation7 + $0x30] sm:$0xf]
    %v1077 = vld [vmem:[#allocation7 + $0x34] sm:$0xf]
    %v1078 = vld [vmem:[#allocation7 + $0x38] sm:$0xf]
    %v1079 = vld [vmem:[#allocation7 + $0x3c] sm:$0xf]
    %v1080 = vld [vmem:[#allocation7 + $0x40] sm:$0xf]
    %v1081 = vld [vmem:[#allocation7 + $0x44] sm:$0xf]
    %v1082 = vld [vmem:[#allocation7 + $0x48] sm:$0xf]
    %v1083 = vld [vmem:[#allocation7 + $0x4c] sm:$0xf]
    %v1084 = vld [vmem:[#allocation7 + $0x50] sm:$0xf]
    %v1085 = vld [vmem:[#allocation7 + $0x54] sm:$0xf]
    %v1086 = vld [vmem:[#allocation7 + $0x58] sm:$0xf]
    %v1087 = vld [vmem:[#allocation7 + $0x5c] sm:$0xf]
    %v1088 = vld [vmem:[#allocation7 + $0x60] sm:$0xf]
    %v1089 = vld [vmem:[#allocation7 + $0x64] sm:$0xf]
    %v1090 = vld [vmem:[#allocation7 + $0x68] sm:$0xf]
    %v1091 = vld [vmem:[#allocation7 + $0x6c] sm:$0xf]
    %v1092 = vld [vmem:[#allocation7 + $0x70] sm:$0xf]
    %v1093 = vld [vmem:[#allocation7 + $0x74] sm:$0xf]
    %v1094 = vld [vmem:[#allocation7 + $0x78] sm:$0xf]
    %v1095 = vld [vmem:[#allocation7 + $0x7c] sm:$0xf]
    %v1096 = vld [vmem:[#allocation7 + $0x80] sm:$0xf]
    %v1097 = vld [vmem:[#allocation7 + $0x84] sm:$0xf]
    %v1098 = vld [vmem:[#allocation7 + $0x88] sm:$0xf]
    %v1099 = vld [vmem:[#allocation7 + $0x8c] sm:$0xf]
    %v1100 = vld [vmem:[#allocation7 + $0x90] sm:$0xf]
    %v1101 = vld [vmem:[#allocation7 + $0x94] sm:$0xf]
    %v1102 = vld [vmem:[#allocation7 + $0x98] sm:$0xf]
    %v1103 = vld [vmem:[#allocation7 + $0x9c] sm:$0xf]
    %v1104 = vld [vmem:[#allocation7 + $0xa0] sm:$0xf]
    %v1105 = vld [vmem:[#allocation7 + $0xa4] sm:$0xf]
    %v1106 = vld [vmem:[#allocation7 + $0xa8] sm:$0xf]
    %v1107 = vld [vmem:[#allocation7 + $0xac] sm:$0xf]
    %v1108 = vld [vmem:[#allocation7 + $0xb0] sm:$0xf]
    %v1109 = vld [vmem:[#allocation7 + $0xb4] sm:$0xf]
    %v1110 = vld [vmem:[#allocation7 + $0xb8] sm:$0xf]
    %v1111 = vld [vmem:[#allocation7 + $0xbc] sm:$0xf]
    %v1112 = vld [vmem:[#allocation7 + $0xc0] sm:$0xf]
    %v1113 = vld [vmem:[#allocation7 + $0xc4] sm:$0xf]
    %v1114 = vld [vmem:[#allocation7 + $0xc8] sm:$0xf]
    %v1115 = vld [vmem:[#allocation7 + $0xcc] sm:$0xf]
    %v1116 = vld [vmem:[#allocation7 + $0xd0] sm:$0xf]
    %v1117 = vld [vmem:[#allocation7 + $0xd4] sm:$0xf]
    %v1118 = vld [vmem:[#allocation7 + $0xd8] sm:$0xf]
    %v1119 = vld [vmem:[#allocation7 + $0xdc] sm:$0xf]
    %v1120 = vld [vmem:[#allocation7 + $0xe0] sm:$0xf]
    %v1121 = vld [vmem:[#allocation7 + $0xe4] sm:$0xf]
    %v1122 = vld [vmem:[#allocation7 + $0xe8] sm:$0xf]
    %v1123 = vld [vmem:[#allocation7 + $0xec] sm:$0xf]
    %v1124 = vld [vmem:[#allocation7 + $0xf0] sm:$0xf]
    %v1125 = vld [vmem:[#allocation7 + $0xf4] sm:$0xf]
    %v1126 = vld [vmem:[#allocation7 + $0xf8] sm:$0xf]
    %v1127 = vld [vmem:[#allocation7 + $0xfc] sm:$0xf]
    %v1128 = vld [vmem:[%s4] sm:$0x1]
    %v1130 = vlaneseq
    %v1131 = vshrl.u32 %v1130, 7
    %v1132 = vsub.s32 0, %v1131
    %v1133 = vrot.slane %v1128, %v1132
    %v1199 = vunpack.c.l.b16 %v1064
    %v1200 = vunpack.c.l.b16 %v1065
    %v1201 = vunpack.c.l.b16 %v1066
    %v1202 = vunpack.c.l.b16 %v1067
    %v1203 = vunpack.c.l.b16 %v1068
    %v1204 = vunpack.c.l.b16 %v1069
    %v1205 = vunpack.c.l.b16 %v1070
    %v1206 = vunpack.c.l.b16 %v1071
    %v1207 = vunpack.c.l.b16 %v1072
    %v1208 = vunpack.c.l.b16 %v1073
    %v1209 = vunpack.c.l.b16 %v1074
    %v1210 = vunpack.c.l.b16 %v1075
    %v1211 = vunpack.c.l.b16 %v1076
    %v1212 = vunpack.c.l.b16 %v1077
    %v1213 = vunpack.c.l.b16 %v1078
    %v1214 = vunpack.c.l.b16 %v1079
    %v1215 = vunpack.c.l.b16 %v1080
    %v1216 = vunpack.c.l.b16 %v1081
    %v1217 = vunpack.c.l.b16 %v1082
    %v1218 = vunpack.c.l.b16 %v1083
    %v1219 = vunpack.c.l.b16 %v1084
    %v1220 = vunpack.c.l.b16 %v1085
    %v1221 = vunpack.c.l.b16 %v1086
    %v1222 = vunpack.c.l.b16 %v1087
    %v1223 = vunpack.c.l.b16 %v1088
    %v1224 = vunpack.c.l.b16 %v1089
    %v1225 = vunpack.c.l.b16 %v1090
    %v1226 = vunpack.c.l.b16 %v1091
    %v1227 = vunpack.c.l.b16 %v1092
    %v1228 = vunpack.c.l.b16 %v1093
    %v1229 = vunpack.c.l.b16 %v1094
    %v1230 = vunpack.c.l.b16 %v1095
    %v1231 = vunpack.c.l.b16 %v1096
    %v1232 = vunpack.c.l.b16 %v1097
    %v1233 = vunpack.c.l.b16 %v1098
    %v1234 = vunpack.c.l.b16 %v1099
    %v1235 = vunpack.c.l.b16 %v1100
    %v1236 = vunpack.c.l.b16 %v1101
    %v1237 = vunpack.c.l.b16 %v1102
    %v1238 = vunpack.c.l.b16 %v1103
    %v1239 = vunpack.c.l.b16 %v1104
    %v1240 = vunpack.c.l.b16 %v1105
    %v1241 = vunpack.c.l.b16 %v1106
    %v1242 = vunpack.c.l.b16 %v1107
    %v1243 = vunpack.c.l.b16 %v1108
    %v1244 = vunpack.c.l.b16 %v1109
    %v1245 = vunpack.c.l.b16 %v1110
    %v1246 = vunpack.c.l.b16 %v1111
    %v1247 = vunpack.c.l.b16 %v1112
    %v1248 = vunpack.c.l.b16 %v1113
    %v1249 = vunpack.c.l.b16 %v1114
    %v1250 = vunpack.c.l.b16 %v1115
    %v1251 = vunpack.c.l.b16 %v1116
    %v1252 = vunpack.c.l.b16 %v1117
    %v1253 = vunpack.c.l.b16 %v1118
    %v1254 = vunpack.c.l.b16 %v1119
    %v1255 = vunpack.c.l.b16 %v1120
    %v1256 = vunpack.c.l.b16 %v1121
    %v1257 = vunpack.c.l.b16 %v1122
    %v1258 = vunpack.c.l.b16 %v1123
    %v1259 = vunpack.c.l.b16 %v1124
    %v1260 = vunpack.c.l.b16 %v1125
    %v1261 = vunpack.c.l.b16 %v1126
    %v1262 = vunpack.c.l.b16 %v1127
    %v1263 = vpack.c.b16 %v1200, %v1199
    %v1264 = vpack.c.b16 %v1202, %v1201
    %v1265 = vpack.c.b16 %v1204, %v1203
    %v1266 = vpack.c.b16 %v1206, %v1205
    %v1267 = vpack.c.b16 %v1208, %v1207
    %v1268 = vpack.c.b16 %v1210, %v1209
    %v1269 = vpack.c.b16 %v1212, %v1211
    %v1270 = vpack.c.b16 %v1214, %v1213
    %v1271 = vpack.c.b16 %v1216, %v1215
    %v1272 = vpack.c.b16 %v1218, %v1217
    %v1273 = vpack.c.b16 %v1220, %v1219
    %v1274 = vpack.c.b16 %v1222, %v1221
    %v1275 = vpack.c.b16 %v1224, %v1223
    %v1276 = vpack.c.b16 %v1226, %v1225
    %v1277 = vpack.c.b16 %v1228, %v1227
    %v1278 = vpack.c.b16 %v1230, %v1229
    %v1279 = vpack.c.b16 %v1232, %v1231
    %v1280 = vpack.c.b16 %v1234, %v1233
    %v1281 = vpack.c.b16 %v1236, %v1235
    %v1282 = vpack.c.b16 %v1238, %v1237
    %v1283 = vpack.c.b16 %v1240, %v1239
    %v1284 = vpack.c.b16 %v1242, %v1241
    %v1285 = vpack.c.b16 %v1244, %v1243
    %v1286 = vpack.c.b16 %v1246, %v1245
    %v1287 = vpack.c.b16 %v1248, %v1247
    %v1288 = vpack.c.b16 %v1250, %v1249
    %v1289 = vpack.c.b16 %v1252, %v1251
    %v1290 = vpack.c.b16 %v1254, %v1253
    %v1291 = vpack.c.b16 %v1256, %v1255
    %v1292 = vpack.c.b16 %v1258, %v1257
    %v1293 = vpack.c.b16 %v1260, %v1259
    %v1294 = vpack.c.b16 %v1262, %v1261
    %1327 = vmatprep.subr.bf16.mxu0 0
    %1328 = vmatpush1.bf16.msra.mxu0 %v1263
    %1329 = vmatprep.subr.bf16.mxu0 0
    %1330 = vmatpush1.bf16.msra.mxu0 %v1264
    %1331 = vmatprep.subr.bf16.mxu0 0
    %1332 = vmatpush1.bf16.msra.mxu0 %v1265
    %1333 = vmatprep.subr.bf16.mxu0 0
    %1334 = vmatpush1.bf16.msra.mxu0 %v1266
    %1335 = vmatprep.subr.bf16.mxu0 0
    %1336 = vmatpush1.bf16.msra.mxu0 %v1267
    %1337 = vmatprep.subr.bf16.mxu0 0
    %1338 = vmatpush1.bf16.msra.mxu0 %v1268
    %1339 = vmatprep.subr.bf16.mxu0 0
    %1340 = vmatpush1.bf16.msra.mxu0 %v1269
    %1341 = vmatprep.subr.bf16.mxu0 0
    %1342 = vmatpush1.bf16.msra.mxu0 %v1270
    %1343 = vmatprep.subr.bf16.mxu0 0
    %1344 = vmatpush1.bf16.msra.mxu0 %v1271
    %1345 = vmatprep.subr.bf16.mxu0 0
    %1346 = vmatpush1.bf16.msra.mxu0 %v1272
    %1347 = vmatprep.subr.bf16.mxu0 0
    %1348 = vmatpush1.bf16.msra.mxu0 %v1273
    %1349 = vmatprep.subr.bf16.mxu0 0
    %1350 = vmatpush1.bf16.msra.mxu0 %v1274
    %1351 = vmatprep.subr.bf16.mxu0 0
    %1352 = vmatpush1.bf16.msra.mxu0 %v1275
    %1353 = vmatprep.subr.bf16.mxu0 0
    %1354 = vmatpush1.bf16.msra.mxu0 %v1276
    %1355 = vmatprep.subr.bf16.mxu0 0
    %1356 = vmatpush1.bf16.msra.mxu0 %v1277
    %1357 = vmatprep.subr.bf16.mxu0 0
    %1358 = vmatpush1.bf16.msra.mxu0 %v1278
    %1359 = vmatprep.mubr.bf16.mxu0 %v1061
    %1360 = vmatmul.mubr.bf16.gmra.mrb[0].mxu0 %v1060
    %v1361 = vpop.f32.mrb[0].mxu0
    %v1362 = vadd.f32 %v1133, %v1361
    %v1363 = vpop.f32.mrb[0].mxu0
    %v1364 = vpop.f32.mrb[0].mxu0
    %v1365 = vadd.f32 %v1133, %v1364
    %v1366 = vpop.f32.mrb[0].mxu0
    %1367 = vdwg.mxu0
    %1368 = vmatprep.subr.bf16.mxu0 0
    %1369 = vmatpush1.bf16.msra.mxu0 %v1279
    %1370 = vmatprep.subr.bf16.mxu0 0
    %1371 = vmatpush1.bf16.msra.mxu0 %v1280
    %1372 = vmatprep.subr.bf16.mxu0 0
    %1373 = vmatpush1.bf16.msra.mxu0 %v1281
    %1374 = vmatprep.subr.bf16.mxu0 0
    %1375 = vmatpush1.bf16.msra.mxu0 %v1282
    %1376 = vmatprep.subr.bf16.mxu0 0
    %1377 = vmatpush1.bf16.msra.mxu0 %v1283
    %1378 = vmatprep.subr.bf16.mxu0 0
    %1379 = vmatpush1.bf16.msra.mxu0 %v1284
    %1380 = vmatprep.subr.bf16.mxu0 0
    %1381 = vmatpush1.bf16.msra.mxu0 %v1285
    %1382 = vmatprep.subr.bf16.mxu0 0
    %1383 = vmatpush1.bf16.msra.mxu0 %v1286
    %1384 = vmatprep.subr.bf16.mxu0 0
    %1385 = vmatpush1.bf16.msra.mxu0 %v1287
    %1386 = vmatprep.subr.bf16.mxu0 0
    %1387 = vmatpush1.bf16.msra.mxu0 %v1288
    %1388 = vmatprep.subr.bf16.mxu0 0
    %1389 = vmatpush1.bf16.msra.mxu0 %v1289
    %1390 = vmatprep.subr.bf16.mxu0 0
    %1391 = vmatpush1.bf16.msra.mxu0 %v1290
    %1392 = vmatprep.subr.bf16.mxu0 0
    %1393 = vmatpush1.bf16.msra.mxu0 %v1291
    %1394 = vmatprep.subr.bf16.mxu0 0
    %1395 = vmatpush1.bf16.msra.mxu0 %v1292
    %1396 = vmatprep.subr.bf16.mxu0 0
    %1397 = vmatpush1.bf16.msra.mxu0 %v1293
    %1398 = vmatprep.subr.bf16.mxu0 0
    %1399 = vmatpush1.bf16.msra.mxu0 %v1294
    %1400 = vmatprep.mubr.bf16.mxu0 %v1063
    %1401 = vmatmul.mubr.bf16.gmra.mrb[0].mxu0 %v1062
    %v1402 = vpop.f32.mrb[0].mxu0
    %v1403 = vadd.f32 %v1362, %v1402
    %v1404 = vpop.f32.mrb[0].mxu0
    %v1405 = vpop.f32.mrb[0].mxu0
    %v1406 = vadd.f32 %v1365, %v1405
    %v1407 = vpop.f32.mrb[0].mxu0
    %1408 = vdwg.mxu0
    %v1409 = vld [vmem:[%s5] sm:$0xff]
    %v1410 = vld [vmem:[%s5 + $0x8] sm:$0xff]
    %v1411 = vlaneseq
    %v1412 = vand.u32 %v1411, 127
    %vm1413 = vcmp.lt.s32.totalorder %v1412, 8
    %1414 = vset.pattern.permute.xlu0 0
    %1415 = vperm.xlu0 %1414, %v1409
    %v1416 = vpop.permute.xlu0 %1415
    %1417 = vset.pattern.permute.xlu0 0
    %1418 = vperm.xlu0 %1417, %v1410
    %v1419 = vpop.permute.xlu0 %1418
    %vm1420 = vcmp.ge.s32.totalorder %v1412, %v1416
    %vm1421 = vcmp.ge.s32.totalorder %v1412, %v1419
    %1422 = vset.pattern.permute.xlu0 1
    %1423 = vperm.xlu0 %1422, %v1409
    %v1424 = vpop.permute.xlu0 %1423
    %1425 = vset.pattern.permute.xlu0 1
    %1426 = vperm.xlu0 %1425, %v1410
    %v1427 = vpop.permute.xlu0 %1426
    %vm1428 = vcmp.lt.s32.totalorder %v1412, %v1424
    %vm1429 = vcmp.lt.s32.totalorder %v1412, %v1427
    %vm1430 = vmand %vm1420, %vm1428
    %vm1431 = vmand %vm1421, %vm1429
    %v1432 = vsel %vm1413, %v1403, -inf
    %v1433 = vsel %vm1413, %v1406, -inf
    %1434 = vmax.xlane.f32.xlu0 %v1432
    %v1435 = vpop.xlane.xlu0 %1434
    %1436 = vmax.xlane.f32.xlu0 %v1433
    %v1437 = vpop.xlane.xlu0 %1436
    %v1438 = vsub.f32 %v1432, %v1435
    %v1439 = vsub.f32 %v1433, %v1437
    %v1440 = vmul.f32 %v1438, 1.442695
    %v1441 = vpow.pop %v1440
    %v1442 = vmul.f32 %v1439, 1.442695
    %v1443 = vpow.pop %v1442
    %v1444 = vsel %vm1430, 1.0, 1e-08
    %v1445 = vsel %vm1431, 1.0, 1e-08
    %v1446 = vmul.f32 %v1441, %v1444
    %v1447 = vmul.f32 %v1443, %v1445
    %1448 = vadd.xlane.f32.xlu0 %v1446
    %v1449 = vpop.xlane.xlu0 %1448
    %1450 = vadd.xlane.f32.xlu0 %v1447
    %v1451 = vpop.xlane.xlu0 %1450
    %v1452 = vadd.f32 %v1449, 1e-07
    %v1453 = vadd.f32 %v1451, 1e-07
    %v1454 = vrcp.pop %v1452
    %v1455 = vrcp.pop %v1453
    %v1456 = vmul.f32 %v1446, %v1454
    %v1457 = vmul.f32 %v1447, %v1455
    %1458 = vst [vmem:[#allocation8] sm:$0xff] %v1456
    %1459 = vst [vmem:[#allocation8 + $0x8] sm:$0xff] %v1457
    // Predicated region
    $region38: #{tpu_custom_call.1} parent=1 // pred_check
      _
    $region39: #{tpu_custom_call.1} parent=1 // pred_check_branch
      %1461 = sbr.rel (0) target = $region41
    $region40: #{tpu_custom_call.1} parent=1 // pred_region
      %s1463 = ssub.s32 256, 256
      %1464 = vsyncadd [#allocation4], %s1463
      %s1465 = sshll.u32 [#allocation8], 4
      %s1466 = int_to_ptr.vmem [resolvable:$true] %s1465
      %1471 = dma.vmem_to_hbm [thread:$0]  %s1466, 256, %s6, [#allocation4], 128, 128, 8
    $region41: #{tpu_custom_call.1} parent=1 // pred_fallthru
      _
    // Predicated region
    $region42: #{tpu_custom_call.1} parent=1 // pred_check
      _
    $region43: #{tpu_custom_call.1} parent=1 // pred_check_branch
      %1473 = sbr.rel (0) target = $region45
    $region44: #{tpu_custom_call.1} parent=1 // pred_region
      %1474 = dma.done [#allocation4], 256
    $region45: #{tpu_custom_call.1} parent=1 // pred_fallthru
      _
    %1475 = vsyncpa [#allocation3], 1
    %1476 = vsyncpa [#allocation6], 1
    %1477 = vsyncpa [#allocation4], 1

// kernel: tpu_custom_call.1
$region0: #{tpu_custom_call.1}
  #allocation0 [shape = 'u32[]', space=smem, size = 0x4, offset = 0x4, fixed_abs, tag = 'smem constant byte address 0x4 - core index']
  #allocation1 [shape = 'u32[144,128]{1,0:T(1,128)}', space=vmem, size = 0x12000, scoped, tag = 'internal scratch']
  %s0 = inlined_call_operand.hbm [shape: bf16[16,512], index: 0, kind: input, shape index: {}]
  %s1 = inlined_call_operand.hbm [shape: bf16[512,512], index: 1, kind: input, shape index: {}]
  %s2 = inlined_call_operand.vmem [shape: f32[1,512], index: 2, kind: input, shape index: {}]
  %s3 = inlined_call_operand.hbm [shape: bf16[512,128], index: 3, kind: input, shape index: {}]
  %s4 = inlined_call_operand.vmem [shape: f32[1,128], index: 4, kind: input, shape index: {}]
  %s5 = inlined_call_operand.vmem [shape: s32[16,2], index: 5, kind: input, shape index: {}]
  %s6 = inlined_call_operand.hbm [shape: f32[16,128], index: 6, kind: output, shape index: {}]
  %s7 = sld [smem:[#allocation0]]
  $region46: #{tpu_custom_call.1} parent=0
    _
  %s9 = ssub.s32 1, %s7
  %s10 = scalar_select 0, %s9, %s7
  $region1: #{tpu_custom_call.1} parent=0
    #allocation2 [shape = 'u8[16384]{0}', space=vmem, size = 0x4000, scoped, tag = 'input window, operand 0, single buffered']
    #allocation3 [shape = 's32[1]{0}', space=sflag, size = 0x4, scoped, tag = 'scoped memory for tpu_custom_call.1']
    #allocation4 [shape = 's32[1]{0}', space=sflag, size = 0x4, scoped, tag = 'scoped memory for tpu_custom_call.1']
    #allocation5 [shape = 'u8[524288]{0}', space=vmem, size = 0x80000, scoped, tag = 'input window, operand 1, single buffered']
    #allocation6 [shape = 's32[1]{0}', space=sflag, size = 0x4, scoped, tag = 'scoped memory for tpu_custom_call.1']
    #allocation7 [shape = 'u8[131072]{0}', space=vmem, size = 0x20000, scoped, tag = 'input window, operand 3, single buffered']
    #allocation8 [shape = 'u8[8192]{0}', space=vmem, size = 0x2000, scoped, tag = 'output window, operand 0, single buffered']
    %11 = vsyncpa [#allocation3], 0
    %12 = vsyncpa [#allocation6], 0
    %13 = vsyncpa [#allocation4], 0
    // Predicated region
    $region2: #{tpu_custom_call.1} parent=1 // pred_check
      _
    $region3: #{tpu_custom_call.1} parent=1 // pred_check_branch
      %15 = sbr.rel (0) target = $region5
    $region4: #{tpu_custom_call.1} parent=1 // pred_region
      %s17 = ssub.s32 512, 512
      %18 = vsyncadd [#allocation3], %s17
      %s19 = sshll.u32 [#allocation2], 4
      %s20 = int_to_ptr.vmem [resolvable:$true] %s19
      %25 = dma.hbm_to_vmem [thread:$0]  %s0, 512, %s20, [#allocation3], 256, 256, 16
    $region5: #{tpu_custom_call.1} parent=1 // pred_fallthru
      _
    // Predicated region
    $region6: #{tpu_custom_call.1} parent=1 // pred_check
      _
    $region7: #{tpu_custom_call.1} parent=1 // pred_check_branch
      %27 = sbr.rel (0) target = $region9
    $region8: #{tpu_custom_call.1} parent=1 // pred_region
      %s29 = ssub.s32 16384, 16384
      %30 = vsyncadd [#allocation6], %s29
      %s31 = sshll.u32 [#allocation5], 4
      %s32 = int_to_ptr.vmem [resolvable:$true] %s31
      %37 = dma.hbm_to_vmem [thread:$0]  %s1, 16384, %s32, [#allocation6], 256, 256, 16
    $region9: #{tpu_custom_call.1} parent=1 // pred_fallthru
      _
    // Predicated region
    $region10: #{tpu_custom_call.1} parent=1 // pred_check
      _
    $region11: #{tpu_custom_call.1} parent=1 // pred_check_branch
      %39 = sbr.rel (0) target = $region13
    $region12: #{tpu_custom_call.1} parent=1 // pred_region
      _
    $region13: #{tpu_custom_call.1} parent=1 // pred_fallthru
      _
    // Predicated region
    $region14: #{tpu_custom_call.1} parent=1 // pred_check
      _
    $region15: #{tpu_custom_call.1} parent=1 // pred_check_branch
      %41 = sbr.rel (0) target = $region17
    $region16: #{tpu_custom_call.1} parent=1 // pred_region
      %s43 = ssub.s32 4096, 4096
      %44 = vsyncadd [#allocation6], %s43
      %s45 = sshll.u32 [#allocation7], 4
      %s46 = int_to_ptr.vmem [resolvable:$true] %s45
      %51 = dma.hbm_to_vmem [thread:$0]  %s3, 4096, %s46, [#allocation6], 64, 64, 4
    $region17: #{tpu_custom_call.1} parent=1 // pred_fallthru
      _
    // Predicated region
    $region18: #{tpu_custom_call.1} parent=1 // pred_check
      _
    $region19: #{tpu_custom_call.1} parent=1 // pred_check_branch
      %53 = sbr.rel (0) target = $region21
    $region20: #{tpu_custom_call.1} parent=1 // pred_region
      _
    $region21: #{tpu_custom_call.1} parent=1 // pred_fallthru
      _
    // Predicated region
    $region22: #{tpu_custom_call.1} parent=1 // pred_check
      _
    $region23: #{tpu_custom_call.1} parent=1 // pred_check_branch
      %55 = sbr.rel (0) target = $region25
    $region24: #{tpu_custom_call.1} parent=1 // pred_region
      _
    $region25: #{tpu_custom_call.1} parent=1 // pred_fallthru
      _
    // Predicated region
    $region26: #{tpu_custom_call.1} parent=1 // pred_check
      _
    $region27: #{tpu_custom_call.1} parent=1 // pred_check_branch
      %57 = sbr.rel (0) target = $region29
    $region28: #{tpu_custom_call.1} parent=1 // pred_region
      %58 = dma.done [#allocation3], 512
    $region29: #{tpu_custom_call.1} parent=1 // pred_fallthru
      _
    // Predicated region
    $region30: #{tpu_custom_call.1} parent=1 // pred_check
      _
    $region31: #{tpu_custom_call.1} parent=1 // pred_check_branch
      %60 = sbr.rel (0) target = $region33
    $region32: #{tpu_custom_call.1} parent=1 // pred_region
      %61 = dma.done [#allocation6], 16384
    $region33: #{tpu_custom_call.1} parent=1 // pred_fallthru
      _
    // Predicated region
    $region34: #{tpu_custom_call.1} parent=1 // pred_check
      _
    $region35: #{tpu_custom_call.1} parent=1 // pred_check_branch
      %63 = sbr.rel (0) target = $region37
    $region36: #{tpu_custom_call.1} parent=1 // pred_region
      %64 = dma.done [#allocation6], 4096
    $region37: #{tpu_custom_call.1} parent=1 // pred_fallthru
      _
    %v66 = vld [vmem:[#allocation2] sm:$0xff]
    %v67 = vld [vmem:[#allocation2 + $0x8] sm:$0xff]
    %v68 = vld [vmem:[#allocation2 + $0x10] sm:$0xff]
    %v69 = vld [vmem:[#allocation2 + $0x18] sm:$0xff]
    %v70 = vld [vmem:[#allocation5] sm:$0xff]
    %v71 = vld [vmem:[#allocation5 + $0x8] sm:$0xff]
    %v72 = vld [vmem:[#allocation5 + $0x10] sm:$0xff]
    %v73 = vld [vmem:[#allocation5 + $0x18] sm:$0xff]
    %v74 = vld [vmem:[#allocation5 + $0x20] sm:$0xff]
    %v75 = vld [vmem:[#allocation5 + $0x28] sm:$0xff]
    %v76 = vld [vmem:[#allocation5 + $0x30] sm:$0xff]
    %v77 = vld [vmem:[#allocation5 + $0x38] sm:$0xff]
    %v78 = vld [vmem:[#allocation5 + $0x40] sm:$0xff]
    %v79 = vld [vmem:[#allocation5 + $0x48] sm:$0xff]
    %v80 = vld [vmem:[#allocation5 + $0x50] sm:$0xff]
    %v81 = vld [vmem:[#allocation5 + $0x58] sm:$0xff]
    %v82 = vld [vmem:[#allocation5 + $0x60] sm:$0xff]
    %v83 = vld [vmem:[#allocation5 + $0x68] sm:$0xff]
    %v84 = vld [vmem:[#allocation5 + $0x70] sm:$0xff]
    %v85 = vld [vmem:[#allocation5 + $0x78] sm:$0xff]
    %v86 = vld [vmem:[#allocation5 + $0x80] sm:$0xff]
    %v87 = vld [vmem:[#allocation5 + $0x88] sm:$0xff]
    %v88 = vld [vmem:[#allocation5 + $0x90] sm:$0xff]
    %v89 = vld [vmem:[#allocation5 + $0x98] sm:$0xff]
    %v90 = vld [vmem:[#allocation5 + $0xa0] sm:$0xff]
    %v91 = vld [vmem:[#allocation5 + $0xa8] sm:$0xff]
    %v92 = vld [vmem:[#allocation5 + $0xb0] sm:$0xff]
    %v93 = vld [vmem:[#allocation5 + $0xb8] sm:$0xff]
    %v94 = vld [vmem:[#allocation5 + $0xc0] sm:$0xff]
    %v95 = vld [vmem:[#allocation5 + $0xc8] sm:$0xff]
    %v96 = vld [vmem:[#allocation5 + $0xd0] sm:$0xff]
    %v97 = vld [vmem:[#allocation5 + $0xd8] sm:$0xff]
    %v98 = vld [vmem:[#allocation5 + $0xe0] sm:$0xff]
    %v99 = vld [vmem:[#allocation5 + $0xe8] sm:$0xff]
    %v100 = vld [vmem:[#allocation5 + $0xf0] sm:$0xff]
    %v101 = vld [vmem:[#allocation5 + $0xf8] sm:$0xff]
    %v102 = vld [vmem:[#allocation5 + $0x100] sm:$0xff]
    %v103 = vld [vmem:[#allocation5 + $0x108] sm:$0xff]
    %v104 = vld [vmem:[#allocation5 + $0x110] sm:$0xff]
    %v105 = vld [vmem:[#allocation5 + $0x118] sm:$0xff]
    %v106 = vld [vmem:[#allocation5 + $0x120] sm:$0xff]
    %v107 = vld [vmem:[#allocation5 + $0x128] sm:$0xff]
    %v108 = vld [vmem:[#allocation5 + $0x130] sm:$0xff]
    %v109 = vld [vmem:[#allocation5 + $0x138] sm:$0xff]
    %v110 = vld [vmem:[#allocation5 + $0x140] sm:$0xff]
    %v111 = vld [vmem:[#allocation5 + $0x148] sm:$0xff]
    %v112 = vld [vmem:[#allocation5 + $0x150] sm:$0xff]
    %v113 = vld [vmem:[#allocation5 + $0x158] sm:$0xff]
    %v114 = vld [vmem:[#allocation5 + $0x160] sm:$0xff]
    %v115 = vld [vmem:[#allocation5 + $0x168] sm:$0xff]
    %v116 = vld [vmem:[#allocation5 + $0x170] sm:$0xff]
    %v117 = vld [vmem:[#allocation5 + $0x178] sm:$0xff]
    %v118 = vld [vmem:[#allocation5 + $0x180] sm:$0xff]
    %v119 = vld [vmem:[#allocation5 + $0x188] sm:$0xff]
    %v120 = vld [vmem:[#allocation5 + $0x190] sm:$0xff]
    %v121 = vld [vmem:[#allocation5 + $0x198] sm:$0xff]
    %v122 = vld [vmem:[#allocation5 + $0x1a0] sm:$0xff]
    %v123 = vld [vmem:[#allocation5 + $0x1a8] sm:$0xff]
    %v124 = vld [vmem:[#allocation5 + $0x1b0] sm:$0xff]
    %v125 = vld [vmem:[#allocation5 + $0x1b8] sm:$0xff]
    %v126 = vld [vmem:[#allocation5 + $0x1c0] sm:$0xff]
    %v127 = vld [vmem:[#allocation5 + $0x1c8] sm:$0xff]
    %v128 = vld [vmem:[#allocation5 + $0x1d0] sm:$0xff]
    %v129 = vld [vmem:[#allocation5 + $0x1d8] sm:$0xff]
    %v130 = vld [vmem:[#allocation5 + $0x1e0] sm:$0xff]
    %v131 = vld [vmem:[#allocation5 + $0x1e8] sm:$0xff]
    %v132 = vld [vmem:[#allocation5 + $0x1f0] sm:$0xff]
    %v133 = vld [vmem:[#allocation5 + $0x1f8] sm:$0xff]
    %v134 = vld [vmem:[#allocation5 + $0x200] sm:$0xff]
    %v135 = vld [vmem:[#allocation5 + $0x208] sm:$0xff]
    %v136 = vld [vmem:[#allocation5 + $0x210] sm:$0xff]
    %v137 = vld [vmem:[#allocation5 + $0x218] sm:$0xff]
    %v138 = vld [vmem:[#allocation5 + $0x220] sm:$0xff]
    %v139 = vld [vmem:[#allocation5 + $0x228] sm:$0xff]
    %v140 = vld [vmem:[#allocation5 + $0x230] sm:$0xff]
    %v141 = vld [vmem:[#allocation5 + $0x238] sm:$0xff]
    %v142 = vld [vmem:[#allocation5 + $0x240] sm:$0xff]
    %v143 = vld [vmem:[#allocation5 + $0x248] sm:$0xff]
    %v144 = vld [vmem:[#allocation5 + $0x250] sm:$0xff]
    %v145 = vld [vmem:[#allocation5 + $0x258] sm:$0xff]
    %v146 = vld [vmem:[#allocation5 + $0x260] sm:$0xff]
    %v147 = vld [vmem:[#allocation5 + $0x268] sm:$0xff]
    %v148 = vld [vmem:[#allocation5 + $0x270] sm:$0xff]
    %v149 = vld [vmem:[#allocation5 + $0x278] sm:$0xff]
    %v150 = vld [vmem:[#allocation5 + $0x280] sm:$0xff]
    %v151 = vld [vmem:[#allocation5 + $0x288] sm:$0xff]
    %v152 = vld [vmem:[#allocation5 + $0x290] sm:$0xff]
    %v153 = vld [vmem:[#allocation5 + $0x298] sm:$0xff]
    %v154 = vld [vmem:[#allocation5 + $0x2a0] sm:$0xff]
    %v155 = vld [vmem:[#allocation5 + $0x2a8] sm:$0xff]
    %v156 = vld [vmem:[#allocation5 + $0x2b0] sm:$0xff]
    %v157 = vld [vmem:[#allocation5 + $0x2b8] sm:$0xff]
    %v158 = vld [vmem:[#allocation5 + $0x2c0] sm:$0xff]
    %v159 = vld [vmem:[#allocation5 + $0x2c8] sm:$0xff]
    %v160 = vld [vmem:[#allocation5 + $0x2d0] sm:$0xff]
    %v161 = vld [vmem:[#allocation5 + $0x2d8] sm:$0xff]
    %v162 = vld [vmem:[#allocation5 + $0x2e0] sm:$0xff]
    %v163 = vld [vmem:[#allocation5 + $0x2e8] sm:$0xff]
    %v164 = vld [vmem:[#allocation5 + $0x2f0] sm:$0xff]
    %v165 = vld [vmem:[#allocation5 + $0x2f8] sm:$0xff]
    %v166 = vld [vmem:[#allocation5 + $0x300] sm:$0xff]
    %v167 = vld [vmem:[#allocation5 + $0x308] sm:$0xff]
    %v168 = vld [vmem:[#allocation5 + $0x310] sm:$0xff]
    %v169 = vld [vmem:[#allocation5 + $0x318] sm:$0xff]
    %v170 = vld [vmem:[#allocation5 + $0x320] sm:$0xff]
    %v171 = vld [vmem:[#allocation5 + $0x328] sm:$0xff]
    %v172 = vld [vmem:[#allocation5 + $0x330] sm:$0xff]
    %v173 = vld [vmem:[#allocation5 + $0x338] sm:$0xff]
    %v174 = vld [vmem:[#allocation5 + $0x340] sm:$0xff]
    %v175 = vld [vmem:[#allocation5 + $0x348] sm:$0xff]
    %v176 = vld [vmem:[#allocation5 + $0x350] sm:$0xff]
    %v177 = vld [vmem:[#allocation5 + $0x358] sm:$0xff]
    %v178 = vld [vmem:[#allocation5 + $0x360] sm:$0xff]
    %v179 = vld [vmem:[#allocation5 + $0x368] sm:$0xff]
    %v180 = vld [vmem:[#allocation5 + $0x370] sm:$0xff]
    %v181 = vld [vmem:[#allocation5 + $0x378] sm:$0xff]
    %v182 = vld [vmem:[#allocation5 + $0x380] sm:$0xff]
    %v183 = vld [vmem:[#allocation5 + $0x388] sm:$0xff]
    %v184 = vld [vmem:[#allocation5 + $0x390] sm:$0xff]
    %v185 = vld [vmem:[#allocation5 + $0x398] sm:$0xff]
    %v186 = vld [vmem:[#allocation5 + $0x3a0] sm:$0xff]
    %v187 = vld [vmem:[#allocation5 + $0x3a8] sm:$0xff]
    %v188 = vld [vmem:[#allocation5 + $0x3b0] sm:$0xff]
    %v189 = vld [vmem:[#allocation5 + $0x3b8] sm:$0xff]
    %v190 = vld [vmem:[#allocation5 + $0x3c0] sm:$0xff]
    %v191 = vld [vmem:[#allocation5 + $0x3c8] sm:$0xff]
    %v192 = vld [vmem:[#allocation5 + $0x3d0] sm:$0xff]
    %v193 = vld [vmem:[#allocation5 + $0x3d8] sm:$0xff]
    %v194 = vld [vmem:[#allocation5 + $0x3e0] sm:$0xff]
    %v195 = vld [vmem:[#allocation5 + $0x3e8] sm:$0xff]
    %v196 = vld [vmem:[#allocation5 + $0x3f0] sm:$0xff]
    %v197 = vld [vmem:[#allocation5 + $0x3f8] sm:$0xff]
    %v198 = vld [vmem:[%s2] sm:$0xf]
    %v200 = vlaneseq
    %v201 = vshrl.u32 %v200, 7
    %v202 = vsub.s32 0, %v201
    %v203 = vrot.slane %v198, %v202
    %v204 = vlaneseq
    %v205 = vshrl.u32 %v204, 7
    %v206 = vsub.s32 1, %v205
    %v207 = vrot.slane %v198, %v206
    %v208 = vlaneseq
    %v209 = vshrl.u32 %v208, 7
    %v210 = vsub.s32 2, %v209
    %v211 = vrot.slane %v198, %v210
    %v212 = vlaneseq
    %v213 = vshrl.u32 %v212, 7
    %v214 = vsub.s32 3, %v213
    %v215 = vrot.slane %v198, %v214
    %v224 = vunpack.c.l.b16 %v66
    %v225 = vunpack.c.h.b16 %v66
    %v226 = vunpack.c.l.b16 %v67
    %v227 = vunpack.c.h.b16 %v67
    %v228 = vunpack.c.l.b16 %v68
    %v229 = vunpack.c.h.b16 %v68
    %v230 = vunpack.c.l.b16 %v69
    %v231 = vunpack.c.h.b16 %v69
    %v232 = vpack.c.b16 %v228, %v224
    %v233 = vpack.c.b16 %v229, %v225
    %v234 = vpack.c.b16 %v230, %v226
    %v235 = vpack.c.b16 %v231, %v227
    %v368 = vunpack.c.l.b16 %v70
    %v369 = vunpack.c.h.b16 %v70
    %v370 = vunpack.c.l.b16 %v71
    %v371 = vunpack.c.h.b16 %v71
    %v372 = vunpack.c.l.b16 %v72
    %v373 = vunpack.c.h.b16 %v72
    %v374 = vunpack.c.l.b16 %v73
    %v375 = vunpack.c.h.b16 %v73
    %v376 = vunpack.c.l.b16 %v74
    %v377 = vunpack.c.h.b16 %v74
    %v378 = vunpack.c.l.b16 %v75
    %v379 = vunpack.c.h.b16 %v75
    %v380 = vunpack.c.l.b16 %v76
    %v381 = vunpack.c.h.b16 %v76
    %v382 = vunpack.c.l.b16 %v77
    %v383 = vunpack.c.h.b16 %v77
    %v384 = vunpack.c.l.b16 %v78
    %v385 = vunpack.c.h.b16 %v78
    %v386 = vunpack.c.l.b16 %v79
    %v387 = vunpack.c.h.b16 %v79
    %v388 = vunpack.c.l.b16 %v80
    %v389 = vunpack.c.h.b16 %v80
    %v390 = vunpack.c.l.b16 %v81
    %v391 = vunpack.c.h.b16 %v81
    %v392 = vunpack.c.l.b16 %v82
    %v393 = vunpack.c.h.b16 %v82
    %v394 = vunpack.c.l.b16 %v83
    %v395 = vunpack.c.h.b16 %v83
    %v396 = vunpack.c.l.b16 %v84
    %v397 = vunpack.c.h.b16 %v84
    %v398 = vunpack.c.l.b16 %v85
    %v399 = vunpack.c.h.b16 %v85
    %v400 = vunpack.c.l.b16 %v86
    %v401 = vunpack.c.h.b16 %v86
    %v402 = vunpack.c.l.b16 %v87
    %v403 = vunpack.c.h.b16 %v87
    %v404 = vunpack.c.l.b16 %v88
    %v405 = vunpack.c.h.b16 %v88
    %v406 = vunpack.c.l.b16 %v89
    %v407 = vunpack.c.h.b16 %v89
    %v408 = vunpack.c.l.b16 %v90
    %v409 = vunpack.c.h.b16 %v90
    %v410 = vunpack.c.l.b16 %v91
    %v411 = vunpack.c.h.b16 %v91
    %v412 = vunpack.c.l.b16 %v92
    %v413 = vunpack.c.h.b16 %v92
    %v414 = vunpack.c.l.b16 %v93
    %v415 = vunpack.c.h.b16 %v93
    %v416 = vunpack.c.l.b16 %v94
    %v417 = vunpack.c.h.b16 %v94
    %v418 = vunpack.c.l.b16 %v95
    %v419 = vunpack.c.h.b16 %v95
    %v420 = vunpack.c.l.b16 %v96
    %v421 = vunpack.c.h.b16 %v96
    %v422 = vunpack.c.l.b16 %v97
    %v423 = vunpack.c.h.b16 %v97
    %v424 = vunpack.c.l.b16 %v98
    %v425 = vunpack.c.h.b16 %v98
    %v426 = vunpack.c.l.b16 %v99
    %v427 = vunpack.c.h.b16 %v99
    %v428 = vunpack.c.l.b16 %v100
    %v429 = vunpack.c.h.b16 %v100
    %v430 = vunpack.c.l.b16 %v101
    %v431 = vunpack.c.h.b16 %v101
    %v432 = vunpack.c.l.b16 %v102
    %v433 = vunpack.c.h.b16 %v102
    %v434 = vunpack.c.l.b16 %v103
    %v435 = vunpack.c.h.b16 %v103
    %v436 = vunpack.c.l.b16 %v104
    %v437 = vunpack.c.h.b16 %v104
    %v438 = vunpack.c.l.b16 %v105
    %v439 = vunpack.c.h.b16 %v105
    %v440 = vunpack.c.l.b16 %v106
    %v441 = vunpack.c.h.b16 %v106
    %v442 = vunpack.c.l.b16 %v107
    %v443 = vunpack.c.h.b16 %v107
    %v444 = vunpack.c.l.b16 %v108
    %v445 = vunpack.c.h.b16 %v108
    %v446 = vunpack.c.l.b16 %v109
    %v447 = vunpack.c.h.b16 %v109
    %v448 = vunpack.c.l.b16 %v110
    %v449 = vunpack.c.h.b16 %v110
    %v450 = vunpack.c.l.b16 %v111
    %v451 = vunpack.c.h.b16 %v111
    %v452 = vunpack.c.l.b16 %v112
    %v453 = vunpack.c.h.b16 %v112
    %v454 = vunpack.c.l.b16 %v113
    %v455 = vunpack.c.h.b16 %v113
    %v456 = vunpack.c.l.b16 %v114
    %v457 = vunpack.c.h.b16 %v114
    %v458 = vunpack.c.l.b16 %v115
    %v459 = vunpack.c.h.b16 %v115
    %v460 = vunpack.c.l.b16 %v116
    %v461 = vunpack.c.h.b16 %v116
    %v462 = vunpack.c.l.b16 %v117
    %v463 = vunpack.c.h.b16 %v117
    %v464 = vunpack.c.l.b16 %v118
    %v465 = vunpack.c.h.b16 %v118
    %v466 = vunpack.c.l.b16 %v119
    %v467 = vunpack.c.h.b16 %v119
    %v468 = vunpack.c.l.b16 %v120
    %v469 = vunpack.c.h.b16 %v120
    %v470 = vunpack.c.l.b16 %v121
    %v471 = vunpack.c.h.b16 %v121
    %v472 = vunpack.c.l.b16 %v122
    %v473 = vunpack.c.h.b16 %v122
    %v474 = vunpack.c.l.b16 %v123
    %v475 = vunpack.c.h.b16 %v123
    %v476 = vunpack.c.l.b16 %v124
    %v477 = vunpack.c.h.b16 %v124
    %v478 = vunpack.c.l.b16 %v125
    %v479 = vunpack.c.h.b16 %v125
    %v480 = vunpack.c.l.b16 %v126
    %v481 = vunpack.c.h.b16 %v126
    %v482 = vunpack.c.l.b16 %v127
    %v483 = vunpack.c.h.b16 %v127
    %v484 = vunpack.c.l.b16 %v128
    %v485 = vunpack.c.h.b16 %v128
    %v486 = vunpack.c.l.b16 %v129
    %v487 = vunpack.c.h.b16 %v129
    %v488 = vunpack.c.l.b16 %v130
    %v489 = vunpack.c.h.b16 %v130
    %v490 = vunpack.c.l.b16 %v131
    %v491 = vunpack.c.h.b16 %v131
    %v492 = vunpack.c.l.b16 %v132
    %v493 = vunpack.c.h.b16 %v132
    %v494 = vunpack.c.l.b16 %v133
    %v495 = vunpack.c.h.b16 %v133
    %v496 = vunpack.c.l.b16 %v134
    %v497 = vunpack.c.h.b16 %v134
    %v498 = vunpack.c.l.b16 %v135
    %v499 = vunpack.c.h.b16 %v135
    %v500 = vunpack.c.l.b16 %v136
    %v501 = vunpack.c.h.b16 %v136
    %v502 = vunpack.c.l.b16 %v137
    %v503 = vunpack.c.h.b16 %v137
    %v504 = vunpack.c.l.b16 %v138
    %v505 = vunpack.c.h.b16 %v138
    %v506 = vunpack.c.l.b16 %v139
    %v507 = vunpack.c.h.b16 %v139
    %v508 = vunpack.c.l.b16 %v140
    %v509 = vunpack.c.h.b16 %v140
    %v510 = vunpack.c.l.b16 %v141
    %v511 = vunpack.c.h.b16 %v141
    %v512 = vunpack.c.l.b16 %v142
    %v513 = vunpack.c.h.b16 %v142
    %v514 = vunpack.c.l.b16 %v143
    %v515 = vunpack.c.h.b16 %v143
    %v516 = vunpack.c.l.b16 %v144
    %v517 = vunpack.c.h.b16 %v144
    %v518 = vunpack.c.l.b16 %v145
    %v519 = vunpack.c.h.b16 %v145
    %v520 = vunpack.c.l.b16 %v146
    %v521 = vunpack.c.h.b16 %v146
    %v522 = vunpack.c.l.b16 %v147
    %v523 = vunpack.c.h.b16 %v147
    %v524 = vunpack.c.l.b16 %v148
    %v525 = vunpack.c.h.b16 %v148
    %v526 = vunpack.c.l.b16 %v149
    %v527 = vunpack.c.h.b16 %v149
    %v528 = vunpack.c.l.b16 %v150
    %v529 = vunpack.c.h.b16 %v150
    %v530 = vunpack.c.l.b16 %v151
    %v531 = vunpack.c.h.b16 %v151
    %v532 = vunpack.c.l.b16 %v152
    %v533 = vunpack.c.h.b16 %v152
    %v534 = vunpack.c.l.b16 %v153
    %v535 = vunpack.c.h.b16 %v153
    %v536 = vunpack.c.l.b16 %v154
    %v537 = vunpack.c.h.b16 %v154
    %v538 = vunpack.c.l.b16 %v155
    %v539 = vunpack.c.h.b16 %v155
    %v540 = vunpack.c.l.b16 %v156
    %v541 = vunpack.c.h.b16 %v156
    %v542 = vunpack.c.l.b16 %v157
    %v543 = vunpack.c.h.b16 %v157
    %v544 = vunpack.c.l.b16 %v158
    %v545 = vunpack.c.h.b16 %v158
    %v546 = vunpack.c.l.b16 %v159
    %v547 = vunpack.c.h.b16 %v159
    %v548 = vunpack.c.l.b16 %v160
    %v549 = vunpack.c.h.b16 %v160
    %v550 = vunpack.c.l.b16 %v161
    %v551 = vunpack.c.h.b16 %v161
    %v552 = vunpack.c.l.b16 %v162
    %v553 = vunpack.c.h.b16 %v162
    %v554 = vunpack.c.l.b16 %v163
    %v555 = vunpack.c.h.b16 %v163
    %v556 = vunpack.c.l.b16 %v164
    %v557 = vunpack.c.h.b16 %v164
    %v558 = vunpack.c.l.b16 %v165
    %v559 = vunpack.c.h.b16 %v165
    %v560 = vunpack.c.l.b16 %v166
    %v561 = vunpack.c.h.b16 %v166
    %v562 = vunpack.c.l.b16 %v167
    %v563 = vunpack.c.h.b16 %v167
    %v564 = vunpack.c.l.b16 %v168
    %v565 = vunpack.c.h.b16 %v168
    %v566 = vunpack.c.l.b16 %v169
    %v567 = vunpack.c.h.b16 %v169
    %v568 = vunpack.c.l.b16 %v170
    %v569 = vunpack.c.h.b16 %v170
    %v570 = vunpack.c.l.b16 %v171
    %v571 = vunpack.c.h.b16 %v171
    %v572 = vunpack.c.l.b16 %v172
    %v573 = vunpack.c.h.b16 %v172
    %v574 = vunpack.c.l.b16 %v173
    %v575 = vunpack.c.h.b16 %v173
    %v576 = vunpack.c.l.b16 %v174
    %v577 = vunpack.c.h.b16 %v174
    %v578 = vunpack.c.l.b16 %v175
    %v579 = vunpack.c.h.b16 %v175
    %v580 = vunpack.c.l.b16 %v176
    %v581 = vunpack.c.h.b16 %v176
    %v582 = vunpack.c.l.b16 %v177
    %v583 = vunpack.c.h.b16 %v177
    %v584 = vunpack.c.l.b16 %v178
    %v585 = vunpack.c.h.b16 %v178
    %v586 = vunpack.c.l.b16 %v179
    %v587 = vunpack.c.h.b16 %v179
    %v588 = vunpack.c.l.b16 %v180
    %v589 = vunpack.c.h.b16 %v180
    %v590 = vunpack.c.l.b16 %v181
    %v591 = vunpack.c.h.b16 %v181
    %v592 = vunpack.c.l.b16 %v182
    %v593 = vunpack.c.h.b16 %v182
    %v594 = vunpack.c.l.b16 %v183
    %v595 = vunpack.c.h.b16 %v183
    %v596 = vunpack.c.l.b16 %v184
    %v597 = vunpack.c.h.b16 %v184
    %v598 = vunpack.c.l.b16 %v185
    %v599 = vunpack.c.h.b16 %v185
    %v600 = vunpack.c.l.b16 %v186
    %v601 = vunpack.c.h.b16 %v186
    %v602 = vunpack.c.l.b16 %v187
    %v603 = vunpack.c.h.b16 %v187
    %v604 = vunpack.c.l.b16 %v188
    %v605 = vunpack.c.h.b16 %v188
    %v606 = vunpack.c.l.b16 %v189
    %v607 = vunpack.c.h.b16 %v189
    %v608 = vunpack.c.l.b16 %v190
    %v609 = vunpack.c.h.b16 %v190
    %v610 = vunpack.c.l.b16 %v191
    %v611 = vunpack.c.h.b16 %v191
    %v612 = vunpack.c.l.b16 %v192
    %v613 = vunpack.c.h.b16 %v192
    %v614 = vunpack.c.l.b16 %v193
    %v615 = vunpack.c.h.b16 %v193
    %v616 = vunpack.c.l.b16 %v194
    %v617 = vunpack.c.h.b16 %v194
    %v618 = vunpack.c.l.b16 %v195
    %v619 = vunpack.c.h.b16 %v195
    %v620 = vunpack.c.l.b16 %v196
    %v621 = vunpack.c.h.b16 %v196
    %v622 = vunpack.c.l.b16 %v197
    %v623 = vunpack.c.h.b16 %v197
    %v624 = vpack.c.b16 %v372, %v368
    %v625 = vpack.c.b16 %v373, %v369
    %v626 = vpack.c.b16 %v374, %v370
    %v627 = vpack.c.b16 %v375, %v371
    %v628 = vpack.c.b16 %v380, %v376
    %v629 = vpack.c.b16 %v381, %v377
    %v630 = vpack.c.b16 %v382, %v378
    %v631 = vpack.c.b16 %v383, %v379
    %v632 = vpack.c.b16 %v388, %v384
    %v633 = vpack.c.b16 %v389, %v385
    %v634 = vpack.c.b16 %v390, %v386
    %v635 = vpack.c.b16 %v391, %v387
    %v636 = vpack.c.b16 %v396, %v392
    %v637 = vpack.c.b16 %v397, %v393
    %v638 = vpack.c.b16 %v398, %v394
    %v639 = vpack.c.b16 %v399, %v395
    %v640 = vpack.c.b16 %v404, %v400
    %v641 = vpack.c.b16 %v405, %v401
    %v642 = vpack.c.b16 %v406, %v402
    %v643 = vpack.c.b16 %v407, %v403
    %v644 = vpack.c.b16 %v412, %v408
    %v645 = vpack.c.b16 %v413, %v409
    %v646 = vpack.c.b16 %v414, %v410
    %v647 = vpack.c.b16 %v415, %v411
    %v648 = vpack.c.b16 %v420, %v416
    %v649 = vpack.c.b16 %v421, %v417
    %v650 = vpack.c.b16 %v422, %v418
    %v651 = vpack.c.b16 %v423, %v419
    %v652 = vpack.c.b16 %v428, %v424
    %v653 = vpack.c.b16 %v429, %v425
    %v654 = vpack.c.b16 %v430, %v426
    %v655 = vpack.c.b16 %v431, %v427
    %v656 = vpack.c.b16 %v436, %v432
    %v657 = vpack.c.b16 %v437, %v433
    %v658 = vpack.c.b16 %v438, %v434
    %v659 = vpack.c.b16 %v439, %v435
    %v660 = vpack.c.b16 %v444, %v440
    %v661 = vpack.c.b16 %v445, %v441
    %v662 = vpack.c.b16 %v446, %v442
    %v663 = vpack.c.b16 %v447, %v443
    %v664 = vpack.c.b16 %v452, %v448
    %v665 = vpack.c.b16 %v453, %v449
    %v666 = vpack.c.b16 %v454, %v450
    %v667 = vpack.c.b16 %v455, %v451
    %v668 = vpack.c.b16 %v460, %v456
    %v669 = vpack.c.b16 %v461, %v457
    %v670 = vpack.c.b16 %v462, %v458
    %v671 = vpack.c.b16 %v463, %v459
    %v672 = vpack.c.b16 %v468, %v464
    %v673 = vpack.c.b16 %v469, %v465
    %v674 = vpack.c.b16 %v470, %v466
    %v675 = vpack.c.b16 %v471, %v467
    %v676 = vpack.c.b16 %v476, %v472
    %v677 = vpack.c.b16 %v477, %v473
    %v678 = vpack.c.b16 %v478, %v474
    %v679 = vpack.c.b16 %v479, %v475
    %v680 = vpack.c.b16 %v484, %v480
    %v681 = vpack.c.b16 %v485, %v481
    %v682 = vpack.c.b16 %v486, %v482
    %v683 = vpack.c.b16 %v487, %v483
    %v684 = vpack.c.b16 %v492, %v488
    %v685 = vpack.c.b16 %v493, %v489
    %v686 = vpack.c.b16 %v494, %v490
    %v687 = vpack.c.b16 %v495, %v491
    %v688 = vpack.c.b16 %v500, %v496
    %v689 = vpack.c.b16 %v501, %v497
    %v690 = vpack.c.b16 %v502, %v498
    %v691 = vpack.c.b16 %v503, %v499
    %v692 = vpack.c.b16 %v508, %v504
    %v693 = vpack.c.b16 %v509, %v505
    %v694 = vpack.c.b16 %v510, %v506
    %v695 = vpack.c.b16 %v511, %v507
    %v696 = vpack.c.b16 %v516, %v512
    %v697 = vpack.c.b16 %v517, %v513
    %v698 = vpack.c.b16 %v518, %v514
    %v699 = vpack.c.b16 %v519, %v515
    %v700 = vpack.c.b16 %v524, %v520
    %v701 = vpack.c.b16 %v525, %v521
    %v702 = vpack.c.b16 %v526, %v522
    %v703 = vpack.c.b16 %v527, %v523
    %v704 = vpack.c.b16 %v532, %v528
    %v705 = vpack.c.b16 %v533, %v529
    %v706 = vpack.c.b16 %v534, %v530
    %v707 = vpack.c.b16 %v535, %v531
    %v708 = vpack.c.b16 %v540, %v536
    %v709 = vpack.c.b16 %v541, %v537
    %v710 = vpack.c.b16 %v542, %v538
    %v711 = vpack.c.b16 %v543, %v539
    %v712 = vpack.c.b16 %v548, %v544
    %v713 = vpack.c.b16 %v549, %v545
    %v714 = vpack.c.b16 %v550, %v546
    %v715 = vpack.c.b16 %v551, %v547
    %v716 = vpack.c.b16 %v556, %v552
    %v717 = vpack.c.b16 %v557, %v553
    %v718 = vpack.c.b16 %v558, %v554
    %v719 = vpack.c.b16 %v559, %v555
    %v720 = vpack.c.b16 %v564, %v560
    %v721 = vpack.c.b16 %v565, %v561
    %v722 = vpack.c.b16 %v566, %v562
    %v723 = vpack.c.b16 %v567, %v563
    %v724 = vpack.c.b16 %v572, %v568
    %v725 = vpack.c.b16 %v573, %v569
    %v726 = vpack.c.b16 %v574, %v570
    %v727 = vpack.c.b16 %v575, %v571
    %v728 = vpack.c.b16 %v580, %v576
    %v729 = vpack.c.b16 %v581, %v577
    %v730 = vpack.c.b16 %v582, %v578
    %v731 = vpack.c.b16 %v583, %v579
    %v732 = vpack.c.b16 %v588, %v584
    %v733 = vpack.c.b16 %v589, %v585
    %v734 = vpack.c.b16 %v590, %v586
    %v735 = vpack.c.b16 %v591, %v587
    %v736 = vpack.c.b16 %v596, %v592
    %v737 = vpack.c.b16 %v597, %v593
    %v738 = vpack.c.b16 %v598, %v594
    %v739 = vpack.c.b16 %v599, %v595
    %v740 = vpack.c.b16 %v604, %v600
    %v741 = vpack.c.b16 %v605, %v601
    %v742 = vpack.c.b16 %v606, %v602
    %v743 = vpack.c.b16 %v607, %v603
    %v744 = vpack.c.b16 %v612, %v608
    %v745 = vpack.c.b16 %v613, %v609
    %v746 = vpack.c.b16 %v614, %v610
    %v747 = vpack.c.b16 %v615, %v611
    %v748 = vpack.c.b16 %v620, %v616
    %v749 = vpack.c.b16 %v621, %v617
    %v750 = vpack.c.b16 %v622, %v618
    %v751 = vpack.c.b16 %v623, %v619
    %880 = vmatprep.subr.bf16.mxu0 %v625
    %881 = vmatpush1.bf16.msra.mxu0 %v624
    %882 = vmatprep.subr.bf16.mxu0 %v629
    %883 = vmatpush1.bf16.msra.mxu0 %v628
    %884 = vmatprep.subr.bf16.mxu0 %v633
    %885 = vmatpush1.bf16.msra.mxu0 %v632
    %886 = vmatprep.subr.bf16.mxu0 %v637
    %887 = vmatpush1.bf16.msra.mxu0 %v636
    %888 = vmatprep.subr.bf16.mxu0 %v641
    %889 = vmatpush1.bf16.msra.mxu0 %v640
    %890 = vmatprep.subr.bf16.mxu0 %v645
    %891 = vmatpush1.bf16.msra.mxu0 %v644
    %892 = vmatprep.subr.bf16.mxu0 %v649
    %893 = vmatpush1.bf16.msra.mxu0 %v648
    %894 = vmatprep.subr.bf16.mxu0 %v653
    %895 = vmatpush1.bf16.msra.mxu0 %v652
    %896 = vmatprep.subr.bf16.mxu0 %v657
    %897 = vmatpush1.bf16.msra.mxu0 %v656
    %898 = vmatprep.subr.bf16.mxu0 %v661
    %899 = vmatpush1.bf16.msra.mxu0 %v660
    %900 = vmatprep.subr.bf16.mxu0 %v665
    %901 = vmatpush1.bf16.msra.mxu0 %v664
    %902 = vmatprep.subr.bf16.mxu0 %v669
    %903 = vmatpush1.bf16.msra.mxu0 %v668
    %904 = vmatprep.subr.bf16.mxu0 %v673
    %905 = vmatpush1.bf16.msra.mxu0 %v672
    %906 = vmatprep.subr.bf16.mxu0 %v677
    %907 = vmatpush1.bf16.msra.mxu0 %v676
    %908 = vmatprep.subr.bf16.mxu0 %v681
    %909 = vmatpush1.bf16.msra.mxu0 %v680
    %910 = vmatprep.subr.bf16.mxu0 %v685
    %911 = vmatpush1.bf16.msra.mxu0 %v684
    %912 = vmatprep.mubr.bf16.mxu0 %v233
    %913 = vmatmul.mubr.bf16.gmra.mrb[0].mxu0 %v232
    %v914 = vpop.f32.mrb[0].mxu0
    %v915 = vadd.f32 %v203, %v914
    %v916 = vpop.f32.mrb[0].mxu0
    %v917 = vadd.f32 %v207, %v916
    %v918 = vpop.f32.mrb[0].mxu0
    %v919 = vadd.f32 %v203, %v918
    %v920 = vpop.f32.mrb[0].mxu0
    %v921 = vadd.f32 %v207, %v920
    %922 = vdwg.mxu0
    %923 = vmatprep.subr.bf16.mxu0 %v689
    %924 = vmatpush1.bf16.msra.mxu0 %v688
    %925 = vmatprep.subr.bf16.mxu0 %v693
    %926 = vmatpush1.bf16.msra.mxu0 %v692
    %927 = vmatprep.subr.bf16.mxu0 %v697
    %928 = vmatpush1.bf16.msra.mxu0 %v696
    %929 = vmatprep.subr.bf16.mxu0 %v701
    %930 = vmatpush1.bf16.msra.mxu0 %v700
    %931 = vmatprep.subr.bf16.mxu0 %v705
    %932 = vmatpush1.bf16.msra.mxu0 %v704
    %933 = vmatprep.subr.bf16.mxu0 %v709
    %934 = vmatpush1.bf16.msra.mxu0 %v708
    %935 = vmatprep.subr.bf16.mxu0 %v713
    %936 = vmatpush1.bf16.msra.mxu0 %v712
    %937 = vmatprep.subr.bf16.mxu0 %v717
    %938 = vmatpush1.bf16.msra.mxu0 %v716
    %939 = vmatprep.subr.bf16.mxu0 %v721
    %940 = vmatpush1.bf16.msra.mxu0 %v720
    %941 = vmatprep.subr.bf16.mxu0 %v725
    %942 = vmatpush1.bf16.msra.mxu0 %v724
    %943 = vmatprep.subr.bf16.mxu0 %v729
    %944 = vmatpush1.bf16.msra.mxu0 %v728
    %945 = vmatprep.subr.bf16.mxu0 %v733
    %946 = vmatpush1.bf16.msra.mxu0 %v732
    %947 = vmatprep.subr.bf16.mxu0 %v737
    %948 = vmatpush1.bf16.msra.mxu0 %v736
    %949 = vmatprep.subr.bf16.mxu0 %v741
    %950 = vmatpush1.bf16.msra.mxu0 %v740
    %951 = vmatprep.subr.bf16.mxu0 %v745
    %952 = vmatpush1.bf16.msra.mxu0 %v744
    %953 = vmatprep.subr.bf16.mxu0 %v749
    %954 = vmatpush1.bf16.msra.mxu0 %v748
    %955 = vmatprep.mubr.bf16.mxu0 %v235
    %956 = vmatmul.mubr.bf16.gmra.mrb[0].mxu0 %v234
    %v957 = vpop.f32.mrb[0].mxu0
    %v958 = vadd.f32 %v915, %v957
    %v959 = vpop.f32.mrb[0].mxu0
    %v960 = vadd.f32 %v917, %v959
    %v961 = vpop.f32.mrb[0].mxu0
    %v962 = vadd.f32 %v919, %v961
    %v963 = vpop.f32.mrb[0].mxu0
    %v964 = vadd.f32 %v921, %v963
    %965 = vdwg.mxu0
    %966 = vmatprep.subr.bf16.mxu0 %v627
    %967 = vmatpush1.bf16.msra.mxu0 %v626
    %968 = vmatprep.subr.bf16.mxu0 %v631
    %969 = vmatpush1.bf16.msra.mxu0 %v630
    %970 = vmatprep.subr.bf16.mxu0 %v635
    %971 = vmatpush1.bf16.msra.mxu0 %v634
    %972 = vmatprep.subr.bf16.mxu0 %v639
    %973 = vmatpush1.bf16.msra.mxu0 %v638
    %974 = vmatprep.subr.bf16.mxu0 %v643
    %975 = vmatpush1.bf16.msra.mxu0 %v642
    %976 = vmatprep.subr.bf16.mxu0 %v647
    %977 = vmatpush1.bf16.msra.mxu0 %v646
    %978 = vmatprep.subr.bf16.mxu0 %v651
    %979 = vmatpush1.bf16.msra.mxu0 %v650
    %980 = vmatprep.subr.bf16.mxu0 %v655
    %981 = vmatpush1.bf16.msra.mxu0 %v654
    %982 = vmatprep.subr.bf16.mxu0 %v659
    %983 = vmatpush1.bf16.msra.mxu0 %v658
    %984 = vmatprep.subr.bf16.mxu0 %v663
    %985 = vmatpush1.bf16.msra.mxu0 %v662
    %986 = vmatprep.subr.bf16.mxu0 %v667
    %987 = vmatpush1.bf16.msra.mxu0 %v666
    %988 = vmatprep.subr.bf16.mxu0 %v671
    %989 = vmatpush1.bf16.msra.mxu0 %v670
    %990 = vmatprep.subr.bf16.mxu0 %v675
    %991 = vmatpush1.bf16.msra.mxu0 %v674
    %992 = vmatprep.subr.bf16.mxu0 %v679
    %993 = vmatpush1.bf16.msra.mxu0 %v678
    %994 = vmatprep.subr.bf16.mxu0 %v683
    %995 = vmatpush1.bf16.msra.mxu0 %v682
    %996 = vmatprep.subr.bf16.mxu0 %v687
    %997 = vmatpush1.bf16.msra.mxu0 %v686
    %998 = vmatprep.mubr.bf16.mxu0 %v233
    %999 = vmatmul.mubr.bf16.gmra.mrb[0].mxu0 %v232
    %v1000 = vpop.f32.mrb[0].mxu0
    %v1001 = vadd.f32 %v211, %v1000
    %v1002 = vpop.f32.mrb[0].mxu0
    %v1003 = vadd.f32 %v215, %v1002
    %v1004 = vpop.f32.mrb[0].mxu0
    %v1005 = vadd.f32 %v211, %v1004
    %v1006 = vpop.f32.mrb[0].mxu0
    %v1007 = vadd.f32 %v215, %v1006
    %1008 = vdwg.mxu0
    %1009 = vmatprep.subr.bf16.mxu0 %v691
    %1010 = vmatpush1.bf16.msra.mxu0 %v690
    %1011 = vmatprep.subr.bf16.mxu0 %v695
    %1012 = vmatpush1.bf16.msra.mxu0 %v694
    %1013 = vmatprep.subr.bf16.mxu0 %v699
    %1014 = vmatpush1.bf16.msra.mxu0 %v698
    %1015 = vmatprep.subr.bf16.mxu0 %v703
    %1016 = vmatpush1.bf16.msra.mxu0 %v702
    %1017 = vmatprep.subr.bf16.mxu0 %v707
    %1018 = vmatpush1.bf16.msra.mxu0 %v706
    %1019 = vmatprep.subr.bf16.mxu0 %v711
    %1020 = vmatpush1.bf16.msra.mxu0 %v710
    %1021 = vmatprep.subr.bf16.mxu0 %v715
    %1022 = vmatpush1.bf16.msra.mxu0 %v714
    %1023 = vmatprep.subr.bf16.mxu0 %v719
    %1024 = vmatpush1.bf16.msra.mxu0 %v718
    %1025 = vmatprep.subr.bf16.mxu0 %v723
    %1026 = vmatpush1.bf16.msra.mxu0 %v722
    %1027 = vmatprep.subr.bf16.mxu0 %v727
    %1028 = vmatpush1.bf16.msra.mxu0 %v726
    %1029 = vmatprep.subr.bf16.mxu0 %v731
    %1030 = vmatpush1.bf16.msra.mxu0 %v730
    %1031 = vmatprep.subr.bf16.mxu0 %v735
    %1032 = vmatpush1.bf16.msra.mxu0 %v734
    %1033 = vmatprep.subr.bf16.mxu0 %v739
    %1034 = vmatpush1.bf16.msra.mxu0 %v738
    %1035 = vmatprep.subr.bf16.mxu0 %v743
    %1036 = vmatpush1.bf16.msra.mxu0 %v742
    %1037 = vmatprep.subr.bf16.mxu0 %v747
    %1038 = vmatpush1.bf16.msra.mxu0 %v746
    %1039 = vmatprep.subr.bf16.mxu0 %v751
    %1040 = vmatpush1.bf16.msra.mxu0 %v750
    %1041 = vmatprep.mubr.bf16.mxu0 %v235
    %1042 = vmatmul.mubr.bf16.gmra.mrb[0].mxu0 %v234
    %v1043 = vpop.f32.mrb[0].mxu0
    %v1044 = vadd.f32 %v1001, %v1043
    %v1045 = vpop.f32.mrb[0].mxu0
    %v1046 = vadd.f32 %v1003, %v1045
    %v1047 = vpop.f32.mrb[0].mxu0
    %v1048 = vadd.f32 %v1005, %v1047
    %v1049 = vpop.f32.mrb[0].mxu0
    %v1050 = vadd.f32 %v1007, %v1049
    %1051 = vdwg.mxu0
    %v1052 = vmax.f32 %v958, 0.0
    %v1053 = vmax.f32 %v960, 0.0
    %v1054 = vmax.f32 %v1044, 0.0
    %v1055 = vmax.f32 %v1046, 0.0
    %v1056 = vmax.f32 %v962, 0.0
    %v1057 = vmax.f32 %v964, 0.0
    %v1058 = vmax.f32 %v1048, 0.0
    %v1059 = vmax.f32 %v1050, 0.0
    %v1060 = vpack.c.bf16 %v1056, %v1052
    %v1061 = vpack.c.bf16 %v1057, %v1053
    %v1062 = vpack.c.bf16 %v1058, %v1054
    %v1063 = vpack.c.bf16 %v1059, %v1055
    %v1064 = vld [vmem:[#allocation7] sm:$0xf]
    %v1065 = vld [vmem:[#allocation7 + $0x4] sm:$0xf]
    %v1066 = vld [vmem:[#allocation7 + $0x8] sm:$0xf]
    %v1067 = vld [vmem:[#allocation7 + $0xc] sm:$0xf]
    %v1068 = vld [vmem:[#allocation7 + $0x10] sm:$0xf]
    %v1069 = vld [vmem:[#allocation7 + $0x14] sm:$0xf]
    %v1070 = vld [vmem:[#allocation7 + $0x18] sm:$0xf]
    %v1071 = vld [vmem:[#allocation7 + $0x1c] sm:$0xf]
    %v1072 = vld [vmem:[#allocation7 + $0x20] sm:$0xf]
    %v1073 = vld [vmem:[#allocation7 + $0x24] sm:$0xf]
    %v1074 = vld [vmem:[#allocation7 + $0x28] sm:$0xf]
    %v1075 = vld [vmem:[#allocation7 + $0x2c] sm:$0xf]
    %v1076 = vld [vmem:[#allocation7 + $0x30] sm:$0xf]
    %v1077 = vld [vmem:[#allocation7 + $0x34] sm:$0xf]
    %v1078 = vld [vmem:[#allocation7 + $0x38] sm:$0xf]
    %v1079 = vld [vmem:[#allocation7 + $0x3c] sm:$0xf]
    %v1080 = vld [vmem:[#allocation7 + $0x40] sm:$0xf]
    %v1081 = vld [vmem:[#allocation7 + $0x44] sm:$0xf]
    %v1082 = vld [vmem:[#allocation7 + $0x48] sm:$0xf]
    %v1083 = vld [vmem:[#allocation7 + $0x4c] sm:$0xf]
    %v1084 = vld [vmem:[#allocation7 + $0x50] sm:$0xf]
    %v1085 = vld [vmem:[#allocation7 + $0x54] sm:$0xf]
    %v1086 = vld [vmem:[#allocation7 + $0x58] sm:$0xf]
    %v1087 = vld [vmem:[#allocation7 + $0x5c] sm:$0xf]
    %v1088 = vld [vmem:[#allocation7 + $0x60] sm:$0xf]
    %v1089 = vld [vmem:[#allocation7 + $0x64] sm:$0xf]
    %v1090 = vld [vmem:[#allocation7 + $0x68] sm:$0xf]
    %v1091 = vld [vmem:[#allocation7 + $0x6c] sm:$0xf]
    %v1092 = vld [vmem:[#allocation7 + $0x70] sm:$0xf]
    %v1093 = vld [vmem:[#allocation7 + $0x74] sm:$0xf]
    %v1094 = vld [vmem:[#allocation7 + $0x78] sm:$0xf]
    %v1095 = vld [vmem:[#allocation7 + $0x7c] sm:$0xf]
    %v1096 = vld [vmem:[#allocation7 + $0x80] sm:$0xf]
    %v1097 = vld [vmem:[#allocation7 + $0x84] sm:$0xf]
    %v1098 = vld [vmem:[#allocation7 + $0x88] sm:$0xf]
    %v1099 = vld [vmem:[#allocation7 + $0x8c] sm:$0xf]
    %v1100 = vld [vmem:[#allocation7 + $0x90] sm:$0xf]
    %v1101 = vld [vmem:[#allocation7 + $0x94] sm:$0xf]
    %v1102 = vld [vmem:[#allocation7 + $0x98] sm:$0xf]
    %v1103 = vld [vmem:[#allocation7 + $0x9c] sm:$0xf]
    %v1104 = vld [vmem:[#allocation7 + $0xa0] sm:$0xf]
    %v1105 = vld [vmem:[#allocation7 + $0xa4] sm:$0xf]
    %v1106 = vld [vmem:[#allocation7 + $0xa8] sm:$0xf]
    %v1107 = vld [vmem:[#allocation7 + $0xac] sm:$0xf]
    %v1108 = vld [vmem:[#allocation7 + $0xb0] sm:$0xf]
    %v1109 = vld [vmem:[#allocation7 + $0xb4] sm:$0xf]
    %v1110 = vld [vmem:[#allocation7 + $0xb8] sm:$0xf]
    %v1111 = vld [vmem:[#allocation7 + $0xbc] sm:$0xf]
    %v1112 = vld [vmem:[#allocation7 + $0xc0] sm:$0xf]
    %v1113 = vld [vmem:[#allocation7 + $0xc4] sm:$0xf]
    %v1114 = vld [vmem:[#allocation7 + $0xc8] sm:$0xf]
    %v1115 = vld [vmem:[#allocation7 + $0xcc] sm:$0xf]
    %v1116 = vld [vmem:[#allocation7 + $0xd0] sm:$0xf]
    %v1117 = vld [vmem:[#allocation7 + $0xd4] sm:$0xf]
    %v1118 = vld [vmem:[#allocation7 + $0xd8] sm:$0xf]
    %v1119 = vld [vmem:[#allocation7 + $0xdc] sm:$0xf]
    %v1120 = vld [vmem:[#allocation7 + $0xe0] sm:$0xf]
    %v1121 = vld [vmem:[#allocation7 + $0xe4] sm:$0xf]
    %v1122 = vld [vmem:[#allocation7 + $0xe8] sm:$0xf]
    %v1123 = vld [vmem:[#allocation7 + $0xec] sm:$0xf]
    %v1124 = vld [vmem:[#allocation7 + $0xf0] sm:$0xf]
    %v1125 = vld [vmem:[#allocation7 + $0xf4] sm:$0xf]
    %v1126 = vld [vmem:[#allocation7 + $0xf8] sm:$0xf]
    %v1127 = vld [vmem:[#allocation7 + $0xfc] sm:$0xf]
    %v1128 = vld [vmem:[%s4] sm:$0x1]
    %v1130 = vlaneseq
    %v1131 = vshrl.u32 %v1130, 7
    %v1132 = vsub.s32 0, %v1131
    %v1133 = vrot.slane %v1128, %v1132
    %v1199 = vunpack.c.l.b16 %v1064
    %v1200 = vunpack.c.l.b16 %v1065
    %v1201 = vunpack.c.l.b16 %v1066
    %v1202 = vunpack.c.l.b16 %v1067
    %v1203 = vunpack.c.l.b16 %v1068
    %v1204 = vunpack.c.l.b16 %v1069
    %v1205 = vunpack.c.l.b16 %v1070
    %v1206 = vunpack.c.l.b16 %v1071
    %v1207 = vunpack.c.l.b16 %v1072
    %v1208 = vunpack.c.l.b16 %v1073
    %v1209 = vunpack.c.l.b16 %v1074
    %v1210 = vunpack.c.l.b16 %v1075
    %v1211 = vunpack.c.l.b16 %v1076
    %v1212 = vunpack.c.l.b16 %v1077
    %v1213 = vunpack.c.l.b16 %v1078
    %v1214 = vunpack.c.l.b16 %v1079
    %v1215 = vunpack.c.l.b16 %v1080
    %v1216 = vunpack.c.l.b16 %v1081
    %v1217 = vunpack.c.l.b16 %v1082
    %v1218 = vunpack.c.l.b16 %v1083
    %v1219 = vunpack.c.l.b16 %v1084
    %v1220 = vunpack.c.l.b16 %v1085
    %v1221 = vunpack.c.l.b16 %v1086
    %v1222 = vunpack.c.l.b16 %v1087
    %v1223 = vunpack.c.l.b16 %v1088
    %v1224 = vunpack.c.l.b16 %v1089
    %v1225 = vunpack.c.l.b16 %v1090
    %v1226 = vunpack.c.l.b16 %v1091
    %v1227 = vunpack.c.l.b16 %v1092
    %v1228 = vunpack.c.l.b16 %v1093
    %v1229 = vunpack.c.l.b16 %v1094
    %v1230 = vunpack.c.l.b16 %v1095
    %v1231 = vunpack.c.l.b16 %v1096
    %v1232 = vunpack.c.l.b16 %v1097
    %v1233 = vunpack.c.l.b16 %v1098
    %v1234 = vunpack.c.l.b16 %v1099
    %v1235 = vunpack.c.l.b16 %v1100
    %v1236 = vunpack.c.l.b16 %v1101
    %v1237 = vunpack.c.l.b16 %v1102
    %v1238 = vunpack.c.l.b16 %v1103
    %v1239 = vunpack.c.l.b16 %v1104
    %v1240 = vunpack.c.l.b16 %v1105
    %v1241 = vunpack.c.l.b16 %v1106
    %v1242 = vunpack.c.l.b16 %v1107
    %v1243 = vunpack.c.l.b16 %v1108
    %v1244 = vunpack.c.l.b16 %v1109
    %v1245 = vunpack.c.l.b16 %v1110
    %v1246 = vunpack.c.l.b16 %v1111
    %v1247 = vunpack.c.l.b16 %v1112
    %v1248 = vunpack.c.l.b16 %v1113
    %v1249 = vunpack.c.l.b16 %v1114
    %v1250 = vunpack.c.l.b16 %v1115
    %v1251 = vunpack.c.l.b16 %v1116
    %v1252 = vunpack.c.l.b16 %v1117
    %v1253 = vunpack.c.l.b16 %v1118
    %v1254 = vunpack.c.l.b16 %v1119
    %v1255 = vunpack.c.l.b16 %v1120
    %v1256 = vunpack.c.l.b16 %v1121
    %v1257 = vunpack.c.l.b16 %v1122
    %v1258 = vunpack.c.l.b16 %v1123
    %v1259 = vunpack.c.l.b16 %v1124
    %v1260 = vunpack.c.l.b16 %v1125
    %v1261 = vunpack.c.l.b16 %v1126
    %v1262 = vunpack.c.l.b16 %v1127
    %v1263 = vpack.c.b16 %v1200, %v1199
    %v1264 = vpack.c.b16 %v1202, %v1201
    %v1265 = vpack.c.b16 %v1204, %v1203
    %v1266 = vpack.c.b16 %v1206, %v1205
    %v1267 = vpack.c.b16 %v1208, %v1207
    %v1268 = vpack.c.b16 %v1210, %v1209
    %v1269 = vpack.c.b16 %v1212, %v1211
    %v1270 = vpack.c.b16 %v1214, %v1213
    %v1271 = vpack.c.b16 %v1216, %v1215
    %v1272 = vpack.c.b16 %v1218, %v1217
    %v1273 = vpack.c.b16 %v1220, %v1219
    %v1274 = vpack.c.b16 %v1222, %v1221
    %v1275 = vpack.c.b16 %v1224, %v1223
    %v1276 = vpack.c.b16 %v1226, %v1225
    %v1277 = vpack.c.b16 %v1228, %v1227
    %v1278 = vpack.c.b16 %v1230, %v1229
    %v1279 = vpack.c.b16 %v1232, %v1231
    %v1280 = vpack.c.b16 %v1234, %v1233
    %v1281 = vpack.c.b16 %v1236, %v1235
    %v1282 = vpack.c.b16 %v1238, %v1237
    %v1283 = vpack.c.b16 %v1240, %v1239
    %v1284 = vpack.c.b16 %v1242, %v1241
    %v1285 = vpack.c.b16 %v1244, %v1243
    %v1286 = vpack.c.b16 %v1246, %v1245
    %v1287 = vpack.c.b16 %v1248, %v1247
    %v1288 = vpack.c.b16 %v1250, %v1249
    %v1289 = vpack.c.b16 %v1252, %v1251
    %v1290 = vpack.c.b16 %v1254, %v1253
    %v1291 = vpack.c.b16 %v1256, %v1255
    %v1292 = vpack.c.b16 %v1258, %v1257
    %v1293 = vpack.c.b16 %v1260, %v1259
    %v1294 = vpack.c.b16 %v1262, %v1261
    %1327 = vmatprep.subr.bf16.mxu0 0
    %1328 = vmatpush1.bf16.msra.mxu0 %v1263
    %1329 = vmatprep.subr.bf16.mxu0 0
    %1330 = vmatpush1.bf16.msra.mxu0 %v1264
    %1331 = vmatprep.subr.bf16.mxu0 0
    %1332 = vmatpush1.bf16.msra.mxu0 %v1265
    %1333 = vmatprep.subr.bf16.mxu0 0
    %1334 = vmatpush1.bf16.msra.mxu0 %v1266
    %1335 = vmatprep.subr.bf16.mxu0 0
    %1336 = vmatpush1.bf16.msra.mxu0 %v1267
    %1337 = vmatprep.subr.bf16.mxu0 0
    %1338 = vmatpush1.bf16.msra.mxu0 %v1268
    %1339 = vmatprep.subr.bf16.mxu0 0
    %1340 = vmatpush1.bf16.msra.mxu0 %v1269
    %1341 = vmatprep.subr.bf16.mxu0 0
    %1342 = vmatpush1.bf16.msra.mxu0 %v1270
    %1343 = vmatprep.subr.bf16.mxu0 0
    %1344 = vmatpush1.bf16.msra.mxu0 %v1271
    %1345 = vmatprep.subr.bf16.mxu0 0
    %1346 = vmatpush1.bf16.msra.mxu0 %v1272
    %1347 = vmatprep.subr.bf16.mxu0 0
    %1348 = vmatpush1.bf16.msra.mxu0 %v1273
    %1349 = vmatprep.subr.bf16.mxu0 0
    %1350 = vmatpush1.bf16.msra.mxu0 %v1274
    %1351 = vmatprep.subr.bf16.mxu0 0
    %1352 = vmatpush1.bf16.msra.mxu0 %v1275
    %1353 = vmatprep.subr.bf16.mxu0 0
    %1354 = vmatpush1.bf16.msra.mxu0 %v1276
    %1355 = vmatprep.subr.bf16.mxu0 0
    %1356 = vmatpush1.bf16.msra.mxu0 %v1277
    %1357 = vmatprep.subr.bf16.mxu0 0
    %1358 = vmatpush1.bf16.msra.mxu0 %v1278
    %1359 = vmatprep.mubr.bf16.mxu0 %v1061
    %1360 = vmatmul.mubr.bf16.gmra.mrb[0].mxu0 %v1060
    %v1361 = vpop.f32.mrb[0].mxu0
    %v1362 = vadd.f32 %v1133, %v1361
    %v1363 = vpop.f32.mrb[0].mxu0
    %v1364 = vpop.f32.mrb[0].mxu0
    %v1365 = vadd.f32 %v1133, %v1364
    %v1366 = vpop.f32.mrb[0].mxu0
    %1367 = vdwg.mxu0
    %1368 = vmatprep.subr.bf16.mxu0 0
    %1369 = vmatpush1.bf16.msra.mxu0 %v1279
    %1370 = vmatprep.subr.bf16.mxu0 0
    %1371 = vmatpush1.bf16.msra.mxu0 %v1280
    %1372 = vmatprep.subr.bf16.mxu0 0
    %1373 = vmatpush1.bf16.msra.mxu0 %v1281
    %1374 = vmatprep.subr.bf16.mxu0 0
    %1375 = vmatpush1.bf16.msra.mxu0 %v1282
    %1376 = vmatprep.subr.bf16.mxu0 0
    %1377 = vmatpush1.bf16.msra.mxu0 %v1283
    %1378 = vmatprep.subr.bf16.mxu0 0
    %1379 = vmatpush1.bf16.msra.mxu0 %v1284
    %1380 = vmatprep.subr.bf16.mxu0 0
    %1381 = vmatpush1.bf16.msra.mxu0 %v1285
    %1382 = vmatprep.subr.bf16.mxu0 0
    %1383 = vmatpush1.bf16.msra.mxu0 %v1286
    %1384 = vmatprep.subr.bf16.mxu0 0
    %1385 = vmatpush1.bf16.msra.mxu0 %v1287
    %1386 = vmatprep.subr.bf16.mxu0 0
    %1387 = vmatpush1.bf16.msra.mxu0 %v1288
    %1388 = vmatprep.subr.bf16.mxu0 0
    %1389 = vmatpush1.bf16.msra.mxu0 %v1289
    %1390 = vmatprep.subr.bf16.mxu0 0
    %1391 = vmatpush1.bf16.msra.mxu0 %v1290
    %1392 = vmatprep.subr.bf16.mxu0 0
    %1393 = vmatpush1.bf16.msra.mxu0 %v1291
    %1394 = vmatprep.subr.bf16.mxu0 0
    %1395 = vmatpush1.bf16.msra.mxu0 %v1292
    %1396 = vmatprep.subr.bf16.mxu0 0
    %1397 = vmatpush1.bf16.msra.mxu0 %v1293
    %1398 = vmatprep.subr.bf16.mxu0 0
    %1399 = vmatpush1.bf16.msra.mxu0 %v1294
    %1400 = vmatprep.mubr.bf16.mxu0 %v1063
    %1401 = vmatmul.mubr.bf16.gmra.mrb[0].mxu0 %v1062
    %v1402 = vpop.f32.mrb[0].mxu0
    %v1403 = vadd.f32 %v1362, %v1402
    %v1404 = vpop.f32.mrb[0].mxu0
    %v1405 = vpop.f32.mrb[0].mxu0
    %v1406 = vadd.f32 %v1365, %v1405
    %v1407 = vpop.f32.mrb[0].mxu0
    %1408 = vdwg.mxu0
    %v1409 = vld [vmem:[%s5] sm:$0xff]
    %v1410 = vld [vmem:[%s5 + $0x8] sm:$0xff]
    %v1411 = vlaneseq
    %v1412 = vand.u32 %v1411, 127
    %vm1413 = vcmp.lt.s32.totalorder %v1412, 8
    %1414 = vset.pattern.permute.xlu0 0
    %1415 = vperm.xlu0 %1414, %v1409
    %v1416 = vpop.permute.xlu0 %1415
    %1417 = vset.pattern.permute.xlu0 0
    %1418 = vperm.xlu0 %1417, %v1410
    %v1419 = vpop.permute.xlu0 %1418
    %vm1420 = vcmp.ge.s32.totalorder %v1412, %v1416
    %vm1421 = vcmp.ge.s32.totalorder %v1412, %v1419
    %1422 = vset.pattern.permute.xlu0 1
    %1423 = vperm.xlu0 %1422, %v1409
    %v1424 = vpop.permute.xlu0 %1423
    %1425 = vset.pattern.permute.xlu0 1
    %1426 = vperm.xlu0 %1425, %v1410
    %v1427 = vpop.permute.xlu0 %1426
    %vm1428 = vcmp.lt.s32.totalorder %v1412, %v1424
    %vm1429 = vcmp.lt.s32.totalorder %v1412, %v1427
    %vm1430 = vmand %vm1420, %vm1428
    %vm1431 = vmand %vm1421, %vm1429
    %v1432 = vsel %vm1413, %v1403, -inf
    %v1433 = vsel %vm1413, %v1406, -inf
    %1434 = vmax.xlane.f32.xlu0 %v1432
    %v1435 = vpop.xlane.xlu0 %1434
    %1436 = vmax.xlane.f32.xlu0 %v1433
    %v1437 = vpop.xlane.xlu0 %1436
    %v1438 = vsub.f32 %v1432, %v1435
    %v1439 = vsub.f32 %v1433, %v1437
    %v1440 = vmul.f32 %v1438, 1.442695
    %v1441 = vpow.pop %v1440
    %v1442 = vmul.f32 %v1439, 1.442695
    %v1443 = vpow.pop %v1442
    %v1444 = vsel %vm1430, 1.0, 1e-08
    %v1445 = vsel %vm1431, 1.0, 1e-08
    %v1446 = vmul.f32 %v1441, %v1444
    %v1447 = vmul.f32 %v1443, %v1445
    %1448 = vadd.xlane.f32.xlu0 %v1446
    %v1449 = vpop.xlane.xlu0 %1448
    %1450 = vadd.xlane.f32.xlu0 %v1447
    %v1451 = vpop.xlane.xlu0 %1450
    %v1452 = vadd.f32 %v1449, 1e-07
    %v1453 = vadd.f32 %v1451, 1e-07
    %v1454 = vrcp.pop %v1452
    %v1455 = vrcp.pop %v1453
    %v1456 = vmul.f32 %v1446, %v1454
    %v1457 = vmul.f32 %v1447, %v1455
    %1458 = vst [vmem:[#allocation8] sm:$0xff] %v1456
    %1459 = vst [vmem:[#allocation8 + $0x8] sm:$0xff] %v1457
    // Predicated region
    $region38: #{tpu_custom_call.1} parent=1 // pred_check
      _
    $region39: #{tpu_custom_call.1} parent=1 // pred_check_branch
      %1461 = sbr.rel (0) target = $region41
    $region40: #{tpu_custom_call.1} parent=1 // pred_region
      %s1463 = ssub.s32 256, 256
      %1464 = vsyncadd [#allocation4], %s1463
      %s1465 = sshll.u32 [#allocation8], 4
      %s1466 = int_to_ptr.vmem [resolvable:$true] %s1465
      %1471 = dma.vmem_to_hbm [thread:$0]  %s1466, 256, %s6, [#allocation4], 128, 128, 8
    $region41: #{tpu_custom_call.1} parent=1 // pred_fallthru
      _
    // Predicated region
    $region42: #{tpu_custom_call.1} parent=1 // pred_check
      _
    $region43: #{tpu_custom_call.1} parent=1 // pred_check_branch
      %1473 = sbr.rel (0) target = $region45
    $region44: #{tpu_custom_call.1} parent=1 // pred_region
      %1474 = dma.done [#allocation4], 256
    $region45: #{tpu_custom_call.1} parent=1 // pred_fallthru
      _
    %1475 = vsyncpa [#allocation3], 1
    %1476 = vsyncpa [#allocation6], 1
    %1477 = vsyncpa [#allocation4], 1

</llo_original>
